<compile_context>
chip_gen: v5e
topology: v5e:2x2
jax: 0.10.0
libtpu: 0.0.40
codegen_flags: <defaults>
</compile_context>

<pallas_src>
import math
from functools import partial

import jax
import jax.numpy as jnp
from jax.experimental import pallas as pl
from jax.experimental.pallas import tpu as pltpu


def _mlp_kernel(xc_ref, xp_ref, xn_ref, w1_ref, b1_ref, wdw_ref, bdw_ref,
                w2_ref, b2_ref, o_ref, *, TR, W, compute_dtype, linear):
    """One (batch, row-block) tile: fc1 -> depthwise 3x3 -> GELU -> fc2."""
    C_in = w1_ref.shape[0]
    C_hid = w1_ref.shape[1]
    C_out = w2_ref.shape[1]
    NT = TR * W                                    # tokens in this tile

    rb = pl.program_id(1)
    n_rb = pl.num_programs(1)

    # ---- fc1 on [top-halo-row ; tile ; bottom-halo-row] in ONE MXU matmul --
    # Halo rows are re-computed through fc1 (no cross-step exchange); folding
    # them into the tile matmul keeps the MXU M dimension large and removes
    # the two NT x C_hid concatenate copies of the previous revision.
    xc = xc_ref[0].reshape(NT, C_in)
    x_ext = jnp.concatenate([xp_ref[0, 0], xc, xn_ref[0, 0]], axis=0)
    x_ext = x_ext.astype(compute_dtype)            # bf16 MXU path by default
    h_ext = jnp.dot(x_ext, w1_ref[...], preferred_element_type=jnp.float32)
    h_ext = h_ext + b1_ref[...].astype(jnp.float32)           # (NT+2W, C_hid)
    if linear:                                     # module's optional ReLU
        h_ext = jnp.maximum(h_ext, 0.0)

    hc = h_ext[W:W + NT]          # token t -> h(y,   x)
    h_up = h_ext[:NT]             # token t -> h(y-1, x); first W rows = top halo
    h_dn = h_ext[2 * W:]          # token t -> h(y+1, x); last  W rows = bottom halo

    # Conv 'SAME' zero padding applies to fc1's *output*: the clamped halo rows
    # must read as zeros at the image top / bottom.
    tok = jax.lax.broadcasted_iota(jnp.int32, (NT, 1), 0)
    h_up = jnp.where(jnp.logical_or(rb > 0, tok >= W), h_up, 0.0)
    h_dn = jnp.where(jnp.logical_or(rb < n_rb - 1, tok < NT - W), h_dn, 0.0)

    # ---- depthwise 3x3 (channels on lanes) ---------------------------------
    wdw = wdw_ref[...].astype(jnp.float32)          # (9, C_hid), row = ky*3+kx
    bdw = bdw_ref[...].astype(jnp.float32)          # (1, C_hid)

    # Column partial sums  p_kx[t] = sum_ky w[ky,kx] * h(y+ky-1, x):
    p0 = h_up * wdw[0:1] + hc * wdw[3:4] + h_dn * wdw[6:7]
    p1 = h_up * wdw[1:2] + hc * wdw[4:5] + h_dn * wdw[7:8]
    p2 = h_up * wdw[2:3] + hc * wdw[5:6] + h_dn * wdw[8:9]

    # conv[t] = p0(y, x-1) + p1(y, x) + p2(y, x+1).  Tokens are row-major, so
    # x-1 / x+1 are sublane rolls by +1 / -1 (XLU), with the wrapped edge
    # column masked — that position is the conv's horizontal zero padding.
    col = tok % W
    left = jnp.where(col > 0, pltpu.roll(p0, shift=1, axis=0), 0.0)
    right = jnp.where(col < W - 1, pltpu.roll(p2, shift=NT - 1, axis=0), 0.0)
    acc = p1 + left + right + bdw

    # ---- exact (erf) GELU, matching torch.nn.GELU() default (f32 VPU) ------
    g = 0.5 * acc * (1.0 + jax.lax.erf(acc * (1.0 / math.sqrt(2.0))))

    # ---- fc2 (dropout p = 0 -> identity) -----------------------------------
    # TODO(synk): nn.Dropout is treated as identity (p=0.0 / inference path).
    g = g.astype(compute_dtype)
    out = jnp.dot(g, w2_ref[...], preferred_element_type=jnp.float32)
    out = out + b2_ref[...].astype(jnp.float32)
    o_ref[0] = out.reshape(TR, W, C_out).astype(o_ref.dtype)


def _vmem_capacity_bytes():
    """Physical VMEM per TensorCore; conservative (v7x-sized) fallback."""
    try:
        return int(pltpu.get_tpu_info().vmem_capacity_bytes)
    except Exception:
        return 64 * 1024 * 1024


def _pick_block_rows(H, W, C_in, C_hid, C_out, B, *, x_bytes, w_bytes,
                     vmem_limit, max_tokens=2048):
    """Largest divisor of H whose (rows*W)-token tile fits the VMEM budget."""
    weight_bytes = (C_in * C_hid + C_hid * C_out) * w_bytes \
        + (11 * C_hid + C_out) * 4
    budget = vmem_limit - 2 * weight_bytes - (2 << 20)   # dbl-buffered weights + slack
    # Live per-token bytes: ~8 f32 (C_hid) temporaries (h_ext/h_up/h_dn/p0..p2/
    # acc/rolled), the compute-dtype fc2 input, the f32 out row, and the
    # double-buffered input/output blocks.
    per_token = 8 * C_hid * 4 + C_hid * w_bytes + C_out * 4 \
        + 2 * (C_in + C_out) * x_bytes
    cap_tokens = max(W, budget // per_token) if budget > 0 else W
    cap_tokens = min(cap_tokens, max_tokens)
    cap_rows = max(1, int(cap_tokens // W))
    if B == 1 and H >= 2:
        cap_rows = min(cap_rows, H // 2)   # >= 2 grid steps -> both v7x cores busy
    cap_rows = min(cap_rows, H)
    best = 1
    for d in range(1, cap_rows + 1):
        # TODO(synk): support non-divisor TR with a masked tail block to avoid
        # the TR=1 cliff for prime H (e.g. PVT's 7x7 stage); divisors only now.
        if H % d == 0:
            best = d
    return best


def mlp_pallas(x, params, H, W, *, block_rows=None,
               compute_dtype=jnp.bfloat16, linear=False):
    """x: (B, N, C_in) token-major with N == H*W (same layout as the module)."""
    w1, b1, wdw, bdw, w2, b2 = params
    B, N, C_in = x.shape
    assert N == H * W
    C_hid = w1.shape[1]
    C_out = w2.shape[1]

    # Matmul weights feed the MXU in compute_dtype (bf16 default: native MXU
    # rate, half the resident VMEM / DMA bytes).  Biases and the tiny dwconv
    # weights stay f32 (added to / used with f32 accumulators on the VPU).
    w1c = w1.astype(compute_dtype)
    w2c = w2.astype(compute_dtype)
    wdw9 = wdw.reshape(9, C_hid).astype(jnp.float32)
    b1f = b1.reshape(1, C_hid).astype(jnp.float32)
    bdwf = bdw.reshape(1, C_hid).astype(jnp.float32)
    b2f = b2.reshape(1, C_out).astype(jnp.float32)

    vmem_cap = _vmem_capacity_bytes()
    # ~48 MiB limit on v7x (64 MiB physical), ~96 MiB on v5e/v6e (128 MiB).
    vmem_limit = int(max(32 << 20, min(96 << 20, (vmem_cap * 3) // 4)))
    w_bytes = jnp.dtype(compute_dtype).itemsize

    if block_rows is None:
        block_rows = _pick_block_rows(H, W, C_in, C_hid, C_out, B,
                                      x_bytes=x.dtype.itemsize,
                                      w_bytes=w_bytes, vmem_limit=vmem_limit)
    assert H % block_rows == 0, "block_rows must divide H"
    TR = block_rows
    n_rb = H // TR

    x4 = x.reshape(B, H, W, C_in)        # spatial view for row-block tiling

    kernel = partial(_mlp_kernel, TR=TR, W=W,
                     compute_dtype=compute_dtype, linear=linear)

    flops = 2 * B * N * (C_in * C_hid + 9 * C_hid + C_hid * C_out)
    bytes_accessed = x.size * x.dtype.itemsize \
        + B * N * C_out * x.dtype.itemsize \
        + (C_in * C_hid + C_hid * C_out) * w_bytes + (11 * C_hid + C_out) * 4
    cost = pl.CostEstimate(flops=int(flops),
                           transcendentals=int(B * N * C_hid),
                           bytes_accessed=int(bytes_accessed))

    out4 = pl.pallas_call(
        kernel,
        out_shape=jax.ShapeDtypeStruct((B, H, W, C_out), x.dtype),
        grid_spec=pltpu.PrefetchScalarGridSpec(
            num_scalar_prefetch=0,
            grid=(B, n_rb),
            in_specs=[
                # current row-block of the input image
                pl.BlockSpec((1, TR, W, C_in), lambda b, r: (b, r, 0, 0)),
                # single-row halos (clamped at the borders; masked in-kernel)
                pl.BlockSpec((1, 1, W, C_in),
                             lambda b, r: (b, jnp.maximum(r * TR - 1, 0), 0, 0)),
                pl.BlockSpec((1, 1, W, C_in),
                             lambda b, r: (b, jnp.minimum(r * TR + TR, H - 1), 0, 0)),
                # weights / biases: constant index maps -> no per-step re-DMA
                pl.BlockSpec((C_in, C_hid), lambda b, r: (0, 0)),
                pl.BlockSpec((1, C_hid), lambda b, r: (0, 0)),
                pl.BlockSpec((9, C_hid), lambda b, r: (0, 0)),
                pl.BlockSpec((1, C_hid), lambda b, r: (0, 0)),
                pl.BlockSpec((C_hid, C_out), lambda b, r: (0, 0)),
                pl.BlockSpec((1, C_out), lambda b, r: (0, 0)),
            ],
            out_specs=pl.BlockSpec((1, TR, W, C_out), lambda b, r: (b, r, 0, 0)),
        ),
        compiler_params=pltpu.CompilerParams(
            dimension_semantics=("parallel", "parallel"),
            vmem_limit_bytes=vmem_limit,
        ),
        cost_estimate=cost,
    )(x4, x4, x4, w1c, b1f, wdw9, bdwf, w2c, b2f)

    return out4.reshape(B, N, C_out)


def mlp_ref(x, params, H, W):
    """Pure-JAX reference with the module's exact semantics (for validation)."""
    w1, b1, wdw, bdw, w2, b2 = params
    B, N, _ = x.shape
    C_hid = w1.shape[1]
    hi = jax.lax.Precision.HIGHEST
    h = jnp.dot(x, w1, precision=hi) + b1.reshape(1, -1)
    h4 = h.reshape(B, H, W, C_hid)                              # NHWC
    conv = jax.lax.conv_general_dilated(
        h4, wdw.reshape(3, 3, 1, C_hid),
        window_strides=(1, 1), padding="SAME",
        dimension_numbers=("NHWC", "HWIO", "NHWC"),
        feature_group_count=C_hid, precision=hi)
    conv = conv + bdw.reshape(1, 1, 1, -1)
    g = 0.5 * conv * (1.0 + jax.lax.erf(conv / jnp.sqrt(2.0)))
    g = g.reshape(B, N, C_hid)
    return jnp.dot(g, w2, precision=hi) + b2.reshape(1, -1)


if __name__ == "__main__":
    # Small shapes consistent with the module (tokens of an H x W feature map).
    B, H, W = 2, 16, 16
    N = H * W
    C_in, C_hid, C_out = 64, 256, 64   # in_features, hidden_features, out_features

    key = jax.random.PRNGKey(0)
    k1, k2, k3, k4, k5, k6, kx = jax.random.split(key, 7)

    # Linear weights ~ trunc_normal(std=0.02); depthwise conv ~ N(0, sqrt(2/9)).
    # Biases are random (module inits them to zero) and sized so that halo /
    # tap-indexing bugs would dominate the numeric tolerance below.
    w1 = 0.02 * jax.random.truncated_normal(k1, -2.0, 2.0, (C_in, C_hid), jnp.float32)
    b1 = 0.5 * jax.random.normal(k4, (1, C_hid), jnp.float32)
    wdw = math.sqrt(2.0 / 9.0) * jax.random.normal(k2, (3, 3, C_hid), jnp.float32)
    bdw = 0.5 * jax.random.normal(k5, (1, C_hid), jnp.float32)
    w2 = 0.02 * jax.random.truncated_normal(k3, -2.0, 2.0, (C_hid, C_out), jnp.float32)
    b2 = 0.5 * jax.random.normal(k6, (1, C_out), jnp.float32)
    params = (w1, b1, wdw, bdw, w2, b2)

    x = jax.random.normal(kx, (B, N, C_in), jnp.float32)

    ref = mlp_ref(x, params, H, W)

    # Primary (bf16 MXU) path.  block_rows=4 -> grid (2, 4): exercises the top,
    # interior and bottom halo blocks.  bf16-aware tolerance vs f32 reference.
    out_bf16 = mlp_pallas(x, params, H, W, block_rows=4)
    jax.block_until_ready(out_bf16)
    assert out_bf16.shape == (B, N, C_out)
    assert jnp.allclose(out_bf16, ref, atol=3e-2, rtol=3e-2), "bf16 path mismatch"

    # Strict f32 path with automatic tile sizing (exercises _pick_block_rows and
    # the single-row-block case where both halos are masked inside one tile).
    out_f32 = mlp_pallas(x, params, H, W, compute_dtype=jnp.float32)
    jax.block_until_ready(out_f32)
    assert jnp.allclose(out_f32, ref, atol=5e-3, rtol=5e-3), "f32 path mismatch"

    print("KERNEL_OK")
</pallas_src>

<mosaic_0001>
module attributes {stable_mosaic.version = 11 : i64} {
  func.func @_mlp_kernel(%arg0: i32, %arg1: i32, %arg2: memref<1x4x16x64xf32, #tpu.memory_space<vmem>>, %arg3: memref<1x1x16x64xf32, #tpu.memory_space<vmem>>, %arg4: memref<1x1x16x64xf32, #tpu.memory_space<vmem>>, %arg5: memref<64x256xbf16, #tpu.memory_space<vmem>>, %arg6: memref<1x256xf32, #tpu.memory_space<vmem>>, %arg7: memref<9x256xf32, #tpu.memory_space<vmem>>, %arg8: memref<1x256xf32, #tpu.memory_space<vmem>>, %arg9: memref<256x64xbf16, #tpu.memory_space<vmem>>, %arg10: memref<1x64xf32, #tpu.memory_space<vmem>>, %arg11: memref<1x4x16x64xf32, #tpu.memory_space<vmem>>) attributes {dimension_semantics = [#tpu.dimension_semantics<parallel>, #tpu.dimension_semantics<parallel>], iteration_bounds = array<i64: 2, 4>, scalar_prefetch = 0 : i64, scratch_operands = 0 : i64, tpu.core_type = #tpu.core_type<tc>, window_params = [{transform_indices = @transform_0, window_bounds = array<i64: 1, 4, 16, 64>}, {transform_indices = @transform_1, window_bounds = array<i64: 1, 1, 16, 64>}, {transform_indices = @transform_2, window_bounds = array<i64: 1, 1, 16, 64>}, {pipeline_mode = #tpu.pipeline_mode<synchronous>, transform_indices = @transform_3, window_bounds = array<i64: 64, 256>}, {pipeline_mode = #tpu.pipeline_mode<synchronous>, transform_indices = @transform_4, window_bounds = array<i64: 1, 256>}, {pipeline_mode = #tpu.pipeline_mode<synchronous>, transform_indices = @transform_5, window_bounds = array<i64: 9, 256>}, {pipeline_mode = #tpu.pipeline_mode<synchronous>, transform_indices = @transform_6, window_bounds = array<i64: 1, 256>}, {pipeline_mode = #tpu.pipeline_mode<synchronous>, transform_indices = @transform_7, window_bounds = array<i64: 256, 64>}, {pipeline_mode = #tpu.pipeline_mode<synchronous>, transform_indices = @transform_8, window_bounds = array<i64: 1, 64>}, {transform_indices = @transform_9, window_bounds = array<i64: 1, 4, 16, 64>}]} {
    %c0 = arith.constant 0 : index
    %c0_0 = arith.constant 0 : index
    %c0_1 = arith.constant 0 : index
    %c0_2 = arith.constant 0 : index
    %0 = vector.load %arg2[%c0, %c0_0, %c0_1, %c0_2] : memref<1x4x16x64xf32, #tpu.memory_space<vmem>>, vector<1x4x16x64xf32>
    %1 = vector.shape_cast %0 : vector<1x4x16x64xf32> to vector<4x16x64xf32>
    %2 = vector.shape_cast %1 : vector<4x16x64xf32> to vector<64x64xf32>
    %c0_3 = arith.constant 0 : index
    %c0_4 = arith.constant 0 : index
    %c0_5 = arith.constant 0 : index
    %c0_6 = arith.constant 0 : index
    %3 = vector.load %arg3[%c0_3, %c0_4, %c0_5, %c0_6] : memref<1x1x16x64xf32, #tpu.memory_space<vmem>>, vector<1x1x16x64xf32>
    %4 = vector.shape_cast %3 : vector<1x1x16x64xf32> to vector<16x64xf32>
    %c0_7 = arith.constant 0 : index
    %c0_8 = arith.constant 0 : index
    %c0_9 = arith.constant 0 : index
    %c0_10 = arith.constant 0 : index
    %5 = vector.load %arg4[%c0_7, %c0_8, %c0_9, %c0_10] : memref<1x1x16x64xf32, #tpu.memory_space<vmem>>, vector<1x1x16x64xf32>
    %6 = vector.shape_cast %5 : vector<1x1x16x64xf32> to vector<16x64xf32>
    %7 = tpu.concatenate %4, %2, %6 in 0 : vector<16x64xf32>, vector<64x64xf32>, vector<16x64xf32> -> vector<96x64xf32>
    %8 = arith.truncf %7 : vector<96x64xf32> to vector<96x64xbf16>
    %c0_11 = arith.constant 0 : index
    %c0_12 = arith.constant 0 : index
    %9 = vector.load %arg5[%c0_11, %c0_12] : memref<64x256xbf16, #tpu.memory_space<vmem>>, vector<64x256xbf16>
    %cst = arith.constant dense<0.000000e+00> : vector<96x256xf32>
    %10 = tpu.matmul %8, %9, %cst {dimension_numbers = #tpu.dot_dimension_numbers<[1], [0], [0], [1], [0, 0, 1, 1], [], []>} : vector<96x64xbf16>, vector<64x256xbf16>, vector<96x256xf32> -> vector<96x256xf32>
    %c0_13 = arith.constant 0 : index
    %c0_14 = arith.constant 0 : index
    %11 = vector.load %arg6[%c0_13, %c0_14] : memref<1x256xf32, #tpu.memory_space<vmem>>, vector<1x256xf32>
    %12 = vector.broadcast %11 : vector<1x256xf32> to vector<96x256xf32>
    %13 = arith.addf %10, %12 : vector<96x256xf32>
    %14 = vector.extract_strided_slice %13 {offsets = [16, 0], sizes = [64, 256], strides = [1, 1]} : vector<96x256xf32> to vector<64x256xf32>
    %15 = vector.extract_strided_slice %13 {offsets = [0, 0], sizes = [64, 256], strides = [1, 1]} : vector<96x256xf32> to vector<64x256xf32>
    %16 = vector.extract_strided_slice %13 {offsets = [32, 0], sizes = [64, 256], strides = [1, 1]} : vector<96x256xf32> to vector<64x256xf32>
    %17 = tpu.iota {dimensions = array<i32: 0>} : vector<64x1xi32>
    %c0_i32 = arith.constant 0 : i32
    %18 = arith.cmpi sgt, %arg1, %c0_i32 : i32
    %c16_i32 = arith.constant 16 : i32
    %19 = vector.broadcast %c16_i32 : i32 to vector<64x1xi32>
    %20 = arith.cmpi sge, %17, %19 : vector<64x1xi32>
    %21 = vector.broadcast %18 : i1 to vector<64x1xi1>
    %22 = arith.ori %21, %20 : vector<64x1xi1>
    %cst_15 = arith.constant 0.000000e+00 : f32
    %23 = vector.shape_cast %22 : vector<64x1xi1> to vector<64x1xi1>
    %24 = vector.broadcast %23 : vector<64x1xi1> to vector<64x256xi1>
    %25 = vector.broadcast %cst_15 : f32 to vector<64x256xf32>
    %26 = arith.select %24, %15, %25 : vector<64x256xi1>, vector<64x256xf32>
    %c3_i32 = arith.constant 3 : i32
    %27 = arith.cmpi slt, %arg1, %c3_i32 : i32
    %c48_i32 = arith.constant 48 : i32
    %28 = vector.broadcast %c48_i32 : i32 to vector<64x1xi32>
    %29 = arith.cmpi slt, %17, %28 : vector<64x1xi32>
    %30 = vector.broadcast %27 : i1 to vector<64x1xi1>
    %31 = arith.ori %30, %29 : vector<64x1xi1>
    %cst_16 = arith.constant 0.000000e+00 : f32
    %32 = vector.shape_cast %31 : vector<64x1xi1> to vector<64x1xi1>
    %33 = vector.broadcast %32 : vector<64x1xi1> to vector<64x256xi1>
    %34 = vector.broadcast %cst_16 : f32 to vector<64x256xf32>
    %35 = arith.select %33, %16, %34 : vector<64x256xi1>, vector<64x256xf32>
    %c0_17 = arith.constant 0 : index
    %c0_18 = arith.constant 0 : index
    %36 = vector.load %arg7[%c0_17, %c0_18] : memref<9x256xf32, #tpu.memory_space<vmem>>, vector<9x256xf32>
    %c0_19 = arith.constant 0 : index
    %c0_20 = arith.constant 0 : index
    %37 = vector.load %arg8[%c0_19, %c0_20] : memref<1x256xf32, #tpu.memory_space<vmem>>, vector<1x256xf32>
    %38 = vector.extract_strided_slice %36 {offsets = [0, 0], sizes = [1, 256], strides = [1, 1]} : vector<9x256xf32> to vector<1x256xf32>
    %39 = vector.broadcast %38 : vector<1x256xf32> to vector<64x256xf32>
    %40 = arith.mulf %26, %39 : vector<64x256xf32>
    %41 = vector.extract_strided_slice %36 {offsets = [3, 0], sizes = [1, 256], strides = [1, 1]} : vector<9x256xf32> to vector<1x256xf32>
    %42 = vector.broadcast %41 : vector<1x256xf32> to vector<64x256xf32>
    %43 = arith.mulf %14, %42 : vector<64x256xf32>
    %44 = arith.addf %40, %43 : vector<64x256xf32>
    %45 = vector.extract_strided_slice %36 {offsets = [6, 0], sizes = [1, 256], strides = [1, 1]} : vector<9x256xf32> to vector<1x256xf32>
    %46 = vector.broadcast %45 : vector<1x256xf32> to vector<64x256xf32>
    %47 = arith.mulf %35, %46 : vector<64x256xf32>
    %48 = arith.addf %44, %47 : vector<64x256xf32>
    %49 = vector.extract_strided_slice %36 {offsets = [1, 0], sizes = [1, 256], strides = [1, 1]} : vector<9x256xf32> to vector<1x256xf32>
    %50 = vector.broadcast %49 : vector<1x256xf32> to vector<64x256xf32>
    %51 = arith.mulf %26, %50 : vector<64x256xf32>
    %52 = vector.extract_strided_slice %36 {offsets = [4, 0], sizes = [1, 256], strides = [1, 1]} : vector<9x256xf32> to vector<1x256xf32>
    %53 = vector.broadcast %52 : vector<1x256xf32> to vector<64x256xf32>
    %54 = arith.mulf %14, %53 : vector<64x256xf32>
    %55 = arith.addf %51, %54 : vector<64x256xf32>
    %56 = vector.extract_strided_slice %36 {offsets = [7, 0], sizes = [1, 256], strides = [1, 1]} : vector<9x256xf32> to vector<1x256xf32>
    %57 = vector.broadcast %56 : vector<1x256xf32> to vector<64x256xf32>
    %58 = arith.mulf %35, %57 : vector<64x256xf32>
    %59 = arith.addf %55, %58 : vector<64x256xf32>
    %60 = vector.extract_strided_slice %36 {offsets = [2, 0], sizes = [1, 256], strides = [1, 1]} : vector<9x256xf32> to vector<1x256xf32>
    %61 = vector.broadcast %60 : vector<1x256xf32> to vector<64x256xf32>
    %62 = arith.mulf %26, %61 : vector<64x256xf32>
    %63 = vector.extract_strided_slice %36 {offsets = [5, 0], sizes = [1, 256], strides = [1, 1]} : vector<9x256xf32> to vector<1x256xf32>
    %64 = vector.broadcast %63 : vector<1x256xf32> to vector<64x256xf32>
    %65 = arith.mulf %14, %64 : vector<64x256xf32>
    %66 = arith.addf %62, %65 : vector<64x256xf32>
    %67 = vector.extract_strided_slice %36 {offsets = [8, 0], sizes = [1, 256], strides = [1, 1]} : vector<9x256xf32> to vector<1x256xf32>
    %68 = vector.broadcast %67 : vector<1x256xf32> to vector<64x256xf32>
    %69 = arith.mulf %35, %68 : vector<64x256xf32>
    %70 = arith.addf %66, %69 : vector<64x256xf32>
    %c16_i32_21 = arith.constant 16 : i32
    %c0_i32_22 = arith.constant 0 : i32
    %71 = arith.cmpi eq, %c16_i32_21, %c0_i32_22 : i32
    %c1_i32 = arith.constant 1 : i32
    %72 = arith.select %71, %c1_i32, %c16_i32_21 : i32
    %73 = vector.broadcast %72 : i32 to vector<64x1xi32>
    %74 = arith.remsi %17, %73 : vector<64x1xi32>
    %c0_i32_23 = arith.constant 0 : i32
    %75 = vector.broadcast %c0_i32_23 : i32 to vector<64x1xi32>
    %76 = arith.cmpi ne, %74, %75 : vector<64x1xi32>
    %c0_i32_24 = arith.constant 0 : i32
    %77 = vector.broadcast %c0_i32_24 : i32 to vector<64x1xi32>
    %78 = arith.cmpi slt, %74, %77 : vector<64x1xi32>
    %c0_i32_25 = arith.constant 0 : i32
    %79 = arith.cmpi slt, %72, %c0_i32_25 : i32
    %80 = vector.broadcast %79 : i1 to vector<64x1xi1>
    %81 = vector.broadcast %80 : vector<64x1xi1> to vector<64x1xi1>
    %82 = arith.xori %78, %81 : vector<64x1xi1>
    %83 = arith.andi %82, %76 : vector<64x1xi1>
    %84 = vector.broadcast %72 : i32 to vector<64x1xi32>
    %85 = arith.addi %74, %84 : vector<64x1xi32>
    %86 = arith.select %83, %85, %74 : vector<64x1xi1>, vector<64x1xi32>
    %c0_i32_26 = arith.constant 0 : i32
    %87 = vector.broadcast %c0_i32_26 : i32 to vector<64x1xi32>
    %88 = arith.cmpi sgt, %86, %87 : vector<64x1xi32>
    %c1_i32_27 = arith.constant 1 : i32
    %89 = tpu.dynamic_rotate %48 by %c1_i32_27 dim 0 : vector<64x256xf32>, i32 -> vector<64x256xf32>
    %cst_28 = arith.constant 0.000000e+00 : f32
    %90 = vector.shape_cast %88 : vector<64x1xi1> to vector<64x1xi1>
    %91 = vector.broadcast %90 : vector<64x1xi1> to vector<64x256xi1>
    %92 = vector.broadcast %cst_28 : f32 to vector<64x256xf32>
    %93 = arith.select %91, %89, %92 : vector<64x256xi1>, vector<64x256xf32>
    %c15_i32 = arith.constant 15 : i32
    %94 = vector.broadcast %c15_i32 : i32 to vector<64x1xi32>
    %95 = arith.cmpi slt, %86, %94 : vector<64x1xi32>
    %c63_i32 = arith.constant 63 : i32
    %96 = tpu.dynamic_rotate %70 by %c63_i32 dim 0 : vector<64x256xf32>, i32 -> vector<64x256xf32>
    %cst_29 = arith.constant 0.000000e+00 : f32
    %97 = vector.shape_cast %95 : vector<64x1xi1> to vector<64x1xi1>
    %98 = vector.broadcast %97 : vector<64x1xi1> to vector<64x256xi1>
    %99 = vector.broadcast %cst_29 : f32 to vector<64x256xf32>
    %100 = arith.select %98, %96, %99 : vector<64x256xi1>, vector<64x256xf32>
    %101 = arith.addf %59, %93 : vector<64x256xf32>
    %102 = arith.addf %101, %100 : vector<64x256xf32>
    %103 = vector.broadcast %37 : vector<1x256xf32> to vector<64x256xf32>
    %104 = arith.addf %102, %103 : vector<64x256xf32>
    %cst_30 = arith.constant 5.000000e-01 : f32
    %105 = vector.broadcast %cst_30 : f32 to vector<64x256xf32>
    %106 = arith.mulf %105, %104 : vector<64x256xf32>
    %cst_31 = arith.constant 0.707106769 : f32
    %107 = vector.broadcast %cst_31 : f32 to vector<64x256xf32>
    %108 = arith.mulf %104, %107 : vector<64x256xf32>
    %109 = math.erf %108 : vector<64x256xf32>
    %cst_32 = arith.constant 1.000000e+00 : f32
    %110 = vector.broadcast %cst_32 : f32 to vector<64x256xf32>
    %111 = arith.addf %110, %109 : vector<64x256xf32>
    %112 = arith.mulf %106, %111 : vector<64x256xf32>
    %113 = arith.truncf %112 : vector<64x256xf32> to vector<64x256xbf16>
    %c0_33 = arith.constant 0 : index
    %c0_34 = arith.constant 0 : index
    %114 = vector.load %arg9[%c0_33, %c0_34] : memref<256x64xbf16, #tpu.memory_space<vmem>>, vector<256x64xbf16>
    %cst_35 = arith.constant dense<0.000000e+00> : vector<64x64xf32>
    %115 = tpu.matmul %113, %114, %cst_35 {dimension_numbers = #tpu.dot_dimension_numbers<[1], [0], [0], [1], [0, 0, 1, 1], [], []>} : vector<64x256xbf16>, vector<256x64xbf16>, vector<64x64xf32> -> vector<64x64xf32>
    %c0_36 = arith.constant 0 : index
    %c0_37 = arith.constant 0 : index
    %116 = vector.load %arg10[%c0_36, %c0_37] : memref<1x64xf32, #tpu.memory_space<vmem>>, vector<1x64xf32>
    %117 = vector.broadcast %116 : vector<1x64xf32> to vector<64x64xf32>
    %118 = arith.addf %115, %117 : vector<64x64xf32>
    %119 = vector.shape_cast %118 : vector<64x64xf32> to vector<4x16x64xf32>
    %c0_38 = arith.constant 0 : index
    %c0_39 = arith.constant 0 : index
    %c0_40 = arith.constant 0 : index
    %c0_41 = arith.constant 0 : index
    %120 = vector.load %arg11[%c0_38, %c0_39, %c0_40, %c0_41] : memref<1x4x16x64xf32, #tpu.memory_space<vmem>>, vector<1x4x16x64xf32>
    %121 = vector.shape_cast %120 : vector<1x4x16x64xf32> to vector<4x16x64xf32>
    %122 = vector.shape_cast %119 : vector<4x16x64xf32> to vector<1x4x16x64xf32>
    tpu.vector_store %arg11[%c0_38, %c0_39, %c0_40, %c0_41], %122 {strides = array<i32>} : memref<1x4x16x64xf32, #tpu.memory_space<vmem>>, vector<1x4x16x64xf32>,
    return
  }
  func.func @transform_0(%arg0: i32, %arg1: i32) -> (i32, i32, i32, i32) {
    %c0_i32 = arith.constant 0 : i32
    %c0_i32_0 = arith.constant 0 : i32
    %c0_i32_1 = arith.constant 0 : i32
    return %arg0, %arg1, %c0_i32, %c0_i32_0 : i32, i32, i32, i32
  }
  func.func @transform_1(%arg0: i32, %arg1: i32) -> (i32, i32, i32, i32) {
    %c4_i32 = arith.constant 4 : i32
    %0 = arith.muli %arg1, %c4_i32 : i32
    %c1_i32 = arith.constant 1 : i32
    %1 = arith.subi %0, %c1_i32 : i32
    %c0_i32 = arith.constant 0 : i32
    %2 = arith.maxsi %1, %c0_i32 : i32
    %c0_i32_0 = arith.constant 0 : i32
    %c0_i32_1 = arith.constant 0 : i32
    %c0_i32_2 = arith.constant 0 : i32
    return %arg0, %2, %c0_i32_0, %c0_i32_1 : i32, i32, i32, i32
  }
  func.func @transform_2(%arg0: i32, %arg1: i32) -> (i32, i32, i32, i32) {
    %c4_i32 = arith.constant 4 : i32
    %0 = arith.muli %arg1, %c4_i32 : i32
    %c4_i32_0 = arith.constant 4 : i32
    %1 = arith.addi %0, %c4_i32_0 : i32
    %c15_i32 = arith.constant 15 : i32
    %2 = arith.minsi %1, %c15_i32 : i32
    %c0_i32 = arith.constant 0 : i32
    %c0_i32_1 = arith.constant 0 : i32
    %c0_i32_2 = arith.constant 0 : i32
    return %arg0, %2, %c0_i32, %c0_i32_1 : i32, i32, i32, i32
  }
  func.func @transform_3(%arg0: i32, %arg1: i32) -> (i32, i32) {
    %c0_i32 = arith.constant 0 : i32
    %c0_i32_0 = arith.constant 0 : i32
    %c0_i32_1 = arith.constant 0 : i32
    return %c0_i32, %c0_i32_0 : i32, i32
  }
  func.func @transform_4(%arg0: i32, %arg1: i32) -> (i32, i32) {
    %c0_i32 = arith.constant 0 : i32
    %c0_i32_0 = arith.constant 0 : i32
    %c0_i32_1 = arith.constant 0 : i32
    return %c0_i32, %c0_i32_0 : i32, i32
  }
  func.func @transform_5(%arg0: i32, %arg1: i32) -> (i32, i32) {
    %c0_i32 = arith.constant 0 : i32
    %c0_i32_0 = arith.constant 0 : i32
    %c0_i32_1 = arith.constant 0 : i32
    return %c0_i32, %c0_i32_0 : i32, i32
  }
  func.func @transform_6(%arg0: i32, %arg1: i32) -> (i32, i32) {
    %c0_i32 = arith.constant 0 : i32
    %c0_i32_0 = arith.constant 0 : i32
    %c0_i32_1 = arith.constant 0 : i32
    return %c0_i32, %c0_i32_0 : i32, i32
  }
  func.func @transform_7(%arg0: i32, %arg1: i32) -> (i32, i32) {
    %c0_i32 = arith.constant 0 : i32
    %c0_i32_0 = arith.constant 0 : i32
    %c0_i32_1 = arith.constant 0 : i32
    return %c0_i32, %c0_i32_0 : i32, i32
  }
  func.func @transform_8(%arg0: i32, %arg1: i32) -> (i32, i32) {
    %c0_i32 = arith.constant 0 : i32
    %c0_i32_0 = arith.constant 0 : i32
    %c0_i32_1 = arith.constant 0 : i32
    return %c0_i32, %c0_i32_0 : i32, i32
  }
  func.func @transform_9(%arg0: i32, %arg1: i32) -> (i32, i32, i32, i32) {
    %c0_i32 = arith.constant 0 : i32
    %c0_i32_0 = arith.constant 0 : i32
    %c0_i32_1 = arith.constant 0 : i32
    return %arg0, %arg1, %c0_i32, %c0_i32_0 : i32, i32, i32, i32
  }
}

</mosaic_0001>

<llo_original>
// kernel: tpu_custom_call.1
$region0: #{tpu_custom_call.1}
  #allocation0 [shape = 'u32[]', space=smem, size = 0x4, offset = 0x4, fixed_abs, tag = 'smem constant byte address 0x4 - core index']
  #allocation1 [shape = 'u32[72,128]{1,0:T(1,128)}', space=vmem, size = 0x9000, scoped, tag = 'internal scratch']
  %s0 = inlined_call_operand.hbm [shape: f32[2,16,16,64], index: 0, kind: input, shape index: {}]
  %s1 = inlined_call_operand.hbm [shape: f32[2,16,16,64], index: 1, kind: input, shape index: {}]
  %s2 = inlined_call_operand.hbm [shape: f32[2,16,16,64], index: 2, kind: input, shape index: {}]
  %s3 = inlined_call_operand.vmem [shape: bf16[64,256], index: 3, kind: input, shape index: {}]
  %s4 = inlined_call_operand.vmem [shape: f32[1,256], index: 4, kind: input, shape index: {}]
  %s5 = inlined_call_operand.vmem [shape: f32[9,256], index: 5, kind: input, shape index: {}]
  %s6 = inlined_call_operand.vmem [shape: f32[1,256], index: 6, kind: input, shape index: {}]
  %s7 = inlined_call_operand.vmem [shape: bf16[256,64], index: 7, kind: input, shape index: {}]
  %s8 = inlined_call_operand.vmem [shape: f32[1,64], index: 8, kind: input, shape index: {}]
  %s9 = inlined_call_operand.hbm [shape: f32[2,16,16,64], index: 9, kind: output, shape index: {}]
  %s10 = sld [smem:[#allocation0]]
  $region81: #{tpu_custom_call.1} parent=0
    _
  %s12 = ssub.s32 1, %s10
  %s13 = scalar_select 0, %s12, %s10
  $region1: #{tpu_custom_call.1} parent=0
    #allocation2 [shape = 'u8[65536]{0}', space=vmem, size = 0x10000, scoped, tag = 'input window, operand 0']
    #allocation3 [shape = 's32[2]{0}', space=sflag, size = 0x8, scoped, tag = 'scoped memory for tpu_custom_call.1']
    #allocation4 [shape = 's32[2]{0}', space=sflag, size = 0x8, scoped, tag = 'scoped memory for tpu_custom_call.1']
    #allocation5 [shape = 'u8[16384]{0}', space=vmem, size = 0x4000, scoped, tag = 'input window, operand 1']
    #allocation6 [shape = 's32[2]{0}', space=sflag, size = 0x8, scoped, tag = 'scoped memory for tpu_custom_call.1']
    #allocation7 [shape = 'u8[16384]{0}', space=vmem, size = 0x4000, scoped, tag = 'input window, operand 2']
    #allocation8 [shape = 'u8[65536]{0}', space=vmem, size = 0x10000, scoped, tag = 'output window, operand 0']
    %14 = vsyncpa [#allocation3], 0
    %s15 = scalar_lea.sflag [#allocation3], 1
    %16 = vsyncpa %s15, 0
    %17 = vsyncpa [#allocation6], 0
    %s18 = scalar_lea.sflag [#allocation6], 1
    %19 = vsyncpa %s18, 0
    %20 = vsyncpa [#allocation4], 0
    %s21 = scalar_lea.sflag [#allocation4], 1
    %22 = vsyncpa %s21, 0
    loop: start=0, step=1, limit=10
    $region2: #{tpu_custom_call.1} parent=1 // loop_pre_header
      _
    $region3: #{tpu_custom_call.1} parent=1 // loop_header
      %s24 = sphi 0, %s28
      %p25 = scmp.ge.s32.totalorder %s24, 10
      %s31 = sphi 0, %s43
      %s32 = sphi 0, %s39
      %s33 = sphi 0, %s31
      %s34 = sphi 0, %s32
      %s35 = sphi 0, %s33
      %s36 = sphi 0, %s34
      %s48 = sphi 0, %s50
      %s51 = sphi 0, %s48
      %s52 = sphi 0, %s51
      %s68 = sphi 0, %s52
      %s84 = sphi 0, %s86
      %s87 = sphi 0, %s84
      %s88 = sphi 0, %s87
      %s104 = sphi 0, %s88
      %s120 = sphi 0, %s122
      %s123 = sphi 0, %s120
      %s124 = sphi 0, %s123
      %s140 = sphi 0, %s124
      %s144 = sphi 0, %s144
      %s146 = sphi 0, %s144
      %s147 = sphi 0, %s146
      %s161 = sphi 0, %s147
      %s165 = sphi 0, %s165
      %s167 = sphi 0, %s165
      %s168 = sphi 0, %s167
      %s182 = sphi 0, %s168
      %s186 = sphi 0, %s186
      %s188 = sphi 0, %s186
      %s189 = sphi 0, %s188
      %s203 = sphi 0, %s189
      %s207 = sphi 0, %s207
      %s209 = sphi 0, %s207
      %s210 = sphi 0, %s209
      %s224 = sphi 0, %s210
      %s228 = sphi 0, %s228
      %s230 = sphi 0, %s228
      %s231 = sphi 0, %s230
      %s245 = sphi 0, %s231
      %s249 = sphi 0, %s249
      %s251 = sphi 0, %s249
      %s252 = sphi 0, %s251
      %s266 = sphi 0, %s252
      %s274 = sphi 0, %s276
      %s277 = sphi 0, %s274
      %s278 = sphi 0, %s277
      %s294 = sphi 0, %s278
    $region4: #{tpu_custom_call.1} parent=1 // loop_header_branch
      %27 = sbr.rel (%p25) target = $region8
    $region5: #{tpu_custom_call.1} parent=1 // loop_body
      %s29 = ssub.s32 %s24, 1
      %s30 = ssub.s32 %s24, 2
      %s37 = sadd.s32 1, %s32
      %p38 = scmp.ge.s32.totalorder %s37, 4
      %s39 = scalar_select %p38, 0, %s37
      %s40 = sadd.s32 1, %s31
      %s41 = scalar_select %p38, %s40, %s31
      %p42 = scmp.ge.s32.totalorder %s41, 2
      %s43 = scalar_select %p42, 0, %s41
      %s44 = ssub.s32 %s31, %s43
      %s45 = ssub.s32 %s32, %s39
      %s46 = sor.u32 %s44, %s45
      %p47 = scmp.eq.s32.totalorder %s46, 0
      %s49 = sadd.s32 %s48, 1
      %s50 = scalar_select %p47, %s48, %s49
      %p53 = pneg %p47
      %p54 = scmp.eq.s32.totalorder %s24, 7
      %p55 = por %p53, %p54
      %p56 = scmp.ne.s32.totalorder %s48, %s51
      %p57 = scmp.eq.s32.totalorder %s24, 0
      %p58 = por %p56, %p57
      %p59 = scmp.ne.s32.totalorder %s48, %s51
      %p60 = scmp.eq.s32.totalorder %s29, 7
      %p61 = por %p59, %p60
      %p62 = scmp.ne.s32.totalorder %s51, %s52
      %p63 = scmp.eq.s32.totalorder %s29, 0
      %p64 = por %p62, %p63
      %p65 = scmp.ne.s32.totalorder %s51, %s52
      %p66 = scmp.eq.s32.totalorder %s30, 7
      %p67 = por %p65, %p66
      %p69 = scmp.ne.s32.totalorder %s52, %s68
      %p70 = scmp.eq.s32.totalorder %s30, 0
      %p71 = por %p69, %p70
      %s72 = smul.u32 %s32, 4
      %s73 = ssub.s32 %s72, 1
      %p74 = scmp.gt.s32.totalorder %s73, 0
      %s75 = scalar_select %p74, %s73, 0
      %s76 = smul.u32 %s39, 4
      %s77 = ssub.s32 %s76, 1
      %p78 = scmp.gt.s32.totalorder %s77, 0
      %s79 = scalar_select %p78, %s77, 0
      %s80 = ssub.s32 %s31, %s43
      %s81 = ssub.s32 %s75, %s79
      %s82 = sor.u32 %s80, %s81
      %p83 = scmp.eq.s32.totalorder %s82, 0
      %s85 = sadd.s32 %s84, 1
      %s86 = scalar_select %p83, %s84, %s85
      %p89 = pneg %p83
      %p90 = scmp.eq.s32.totalorder %s24, 7
      %p91 = por %p89, %p90
      %p92 = scmp.ne.s32.totalorder %s84, %s87
      %p93 = scmp.eq.s32.totalorder %s24, 0
      %p94 = por %p92, %p93
      %p95 = scmp.ne.s32.totalorder %s84, %s87
      %p96 = scmp.eq.s32.totalorder %s29, 7
      %p97 = por %p95, %p96
      %p98 = scmp.ne.s32.totalorder %s87, %s88
      %p99 = scmp.eq.s32.totalorder %s29, 0
      %p100 = por %p98, %p99
      %p101 = scmp.ne.s32.totalorder %s87, %s88
      %p102 = scmp.eq.s32.totalorder %s30, 7
      %p103 = por %p101, %p102
      %p105 = scmp.ne.s32.totalorder %s88, %s104
      %p106 = scmp.eq.s32.totalorder %s30, 0
      %p107 = por %p105, %p106
      %s108 = smul.u32 %s32, 4
      %s109 = sadd.s32 %s108, 4
      %p110 = scmp.lt.s32.totalorder %s109, 15
      %s111 = scalar_select %p110, %s109, 15
      %s112 = smul.u32 %s39, 4
      %s113 = sadd.s32 %s112, 4
      %p114 = scmp.lt.s32.totalorder %s113, 15
      %s115 = scalar_select %p114, %s113, 15
      %s116 = ssub.s32 %s31, %s43
      %s117 = ssub.s32 %s111, %s115
      %s118 = sor.u32 %s116, %s117
      %p119 = scmp.eq.s32.totalorder %s118, 0
      %s121 = sadd.s32 %s120, 1
      %s122 = scalar_select %p119, %s120, %s121
      %p125 = pneg %p119
      %p126 = scmp.eq.s32.totalorder %s24, 7
      %p127 = por %p125, %p126
      %p128 = scmp.ne.s32.totalorder %s120, %s123
      %p129 = scmp.eq.s32.totalorder %s24, 0
      %p130 = por %p128, %p129
      %p131 = scmp.ne.s32.totalorder %s120, %s123
      %p132 = scmp.eq.s32.totalorder %s29, 7
      %p133 = por %p131, %p132
      %p134 = scmp.ne.s32.totalorder %s123, %s124
      %p135 = scmp.eq.s32.totalorder %s29, 0
      %p136 = por %p134, %p135
      %p137 = scmp.ne.s32.totalorder %s123, %s124
      %p138 = scmp.eq.s32.totalorder %s30, 7
      %p139 = por %p137, %p138
      %p141 = scmp.ne.s32.totalorder %s124, %s140
      %p142 = scmp.eq.s32.totalorder %s30, 0
      %p143 = por %p141, %p142
      %s145 = sadd.s32 %s144, 1
      %p148 = scmp.eq.s32.totalorder %s24, 7
      %p149 = scmp.ne.s32.totalorder %s144, %s146
      %p150 = scmp.eq.s32.totalorder %s24, 0
      %p151 = por %p149, %p150
      %p152 = scmp.ne.s32.totalorder %s144, %s146
      %p153 = scmp.eq.s32.totalorder %s29, 7
      %p154 = por %p152, %p153
      %p155 = scmp.ne.s32.totalorder %s146, %s147
      %p156 = scmp.eq.s32.totalorder %s29, 0
      %p157 = por %p155, %p156
      %p158 = scmp.ne.s32.totalorder %s146, %s147
      %p159 = scmp.eq.s32.totalorder %s30, 7
      %p160 = por %p158, %p159
      %p162 = scmp.ne.s32.totalorder %s147, %s161
      %p163 = scmp.eq.s32.totalorder %s30, 0
      %p164 = por %p162, %p163
      %s166 = sadd.s32 %s165, 1
      %p169 = scmp.eq.s32.totalorder %s24, 7
      %p170 = scmp.ne.s32.totalorder %s165, %s167
      %p171 = scmp.eq.s32.totalorder %s24, 0
      %p172 = por %p170, %p171
      %p173 = scmp.ne.s32.totalorder %s165, %s167
      %p174 = scmp.eq.s32.totalorder %s29, 7
      %p175 = por %p173, %p174
      %p176 = scmp.ne.s32.totalorder %s167, %s168
      %p177 = scmp.eq.s32.totalorder %s29, 0
      %p178 = por %p176, %p177
      %p179 = scmp.ne.s32.totalorder %s167, %s168
      %p180 = scmp.eq.s32.totalorder %s30, 7
      %p181 = por %p179, %p180
      %p183 = scmp.ne.s32.totalorder %s168, %s182
      %p184 = scmp.eq.s32.totalorder %s30, 0
      %p185 = por %p183, %p184
      %s187 = sadd.s32 %s186, 1
      %p190 = scmp.eq.s32.totalorder %s24, 7
      %p191 = scmp.ne.s32.totalorder %s186, %s188
      %p192 = scmp.eq.s32.totalorder %s24, 0
      %p193 = por %p191, %p192
      %p194 = scmp.ne.s32.totalorder %s186, %s188
      %p195 = scmp.eq.s32.totalorder %s29, 7
      %p196 = por %p194, %p195
      %p197 = scmp.ne.s32.totalorder %s188, %s189
      %p198 = scmp.eq.s32.totalorder %s29, 0
      %p199 = por %p197, %p198
      %p200 = scmp.ne.s32.totalorder %s188, %s189
      %p201 = scmp.eq.s32.totalorder %s30, 7
      %p202 = por %p200, %p201
      %p204 = scmp.ne.s32.totalorder %s189, %s203
      %p205 = scmp.eq.s32.totalorder %s30, 0
      %p206 = por %p204, %p205
      %s208 = sadd.s32 %s207, 1
      %p211 = scmp.eq.s32.totalorder %s24, 7
      %p212 = scmp.ne.s32.totalorder %s207, %s209
      %p213 = scmp.eq.s32.totalorder %s24, 0
      %p214 = por %p212, %p213
      %p215 = scmp.ne.s32.totalorder %s207, %s209
      %p216 = scmp.eq.s32.totalorder %s29, 7
      %p217 = por %p215, %p216
      %p218 = scmp.ne.s32.totalorder %s209, %s210
      %p219 = scmp.eq.s32.totalorder %s29, 0
      %p220 = por %p218, %p219
      %p221 = scmp.ne.s32.totalorder %s209, %s210
      %p222 = scmp.eq.s32.totalorder %s30, 7
      %p223 = por %p221, %p222
      %p225 = scmp.ne.s32.totalorder %s210, %s224
      %p226 = scmp.eq.s32.totalorder %s30, 0
      %p227 = por %p225, %p226
      %s229 = sadd.s32 %s228, 1
      %p232 = scmp.eq.s32.totalorder %s24, 7
      %p233 = scmp.ne.s32.totalorder %s228, %s230
      %p234 = scmp.eq.s32.totalorder %s24, 0
      %p235 = por %p233, %p234
      %p236 = scmp.ne.s32.totalorder %s228, %s230
      %p237 = scmp.eq.s32.totalorder %s29, 7
      %p238 = por %p236, %p237
      %p239 = scmp.ne.s32.totalorder %s230, %s231
      %p240 = scmp.eq.s32.totalorder %s29, 0
      %p241 = por %p239, %p240
      %p242 = scmp.ne.s32.totalorder %s230, %s231
      %p243 = scmp.eq.s32.totalorder %s30, 7
      %p244 = por %p242, %p243
      %p246 = scmp.ne.s32.totalorder %s231, %s245
      %p247 = scmp.eq.s32.totalorder %s30, 0
      %p248 = por %p246, %p247
      %s250 = sadd.s32 %s249, 1
      %p253 = scmp.eq.s32.totalorder %s24, 7
      %p254 = scmp.ne.s32.totalorder %s249, %s251
      %p255 = scmp.eq.s32.totalorder %s24, 0
      %p256 = por %p254, %p255
      %p257 = scmp.ne.s32.totalorder %s249, %s251
      %p258 = scmp.eq.s32.totalorder %s29, 7
      %p259 = por %p257, %p258
      %p260 = scmp.ne.s32.totalorder %s251, %s252
      %p261 = scmp.eq.s32.totalorder %s29, 0
      %p262 = por %p260, %p261
      %p263 = scmp.ne.s32.totalorder %s251, %s252
      %p264 = scmp.eq.s32.totalorder %s30, 7
      %p265 = por %p263, %p264
      %p267 = scmp.ne.s32.totalorder %s252, %s266
      %p268 = scmp.eq.s32.totalorder %s30, 0
      %p269 = por %p267, %p268
      %s270 = ssub.s32 %s31, %s43
      %s271 = ssub.s32 %s32, %s39
      %s272 = sor.u32 %s270, %s271
      %p273 = scmp.eq.s32.totalorder %s272, 0
      %s275 = sadd.s32 %s274, 1
      %s276 = scalar_select %p273, %s274, %s275
      %p279 = pneg %p273
      %p280 = scmp.eq.s32.totalorder %s24, 7
      %p281 = por %p279, %p280
      %p282 = scmp.ne.s32.totalorder %s274, %s277
      %p283 = scmp.eq.s32.totalorder %s24, 0
      %p284 = por %p282, %p283
      %p285 = scmp.ne.s32.totalorder %s274, %s277
      %p286 = scmp.eq.s32.totalorder %s29, 7
      %p287 = por %p285, %p286
      %p288 = scmp.ne.s32.totalorder %s277, %s278
      %p289 = scmp.eq.s32.totalorder %s29, 0
      %p290 = por %p288, %p289
      %p291 = scmp.ne.s32.totalorder %s277, %s278
      %p292 = scmp.eq.s32.totalorder %s30, 7
      %p293 = por %p291, %p292
      %p295 = scmp.ne.s32.totalorder %s278, %s294
      %p296 = scmp.eq.s32.totalorder %s30, 0
      %p297 = por %p295, %p296
      %p298 = scmp.le.s32.totalorder 1, %s24
      %p299 = scmp.lt.s32.totalorder %s24, 9
      %p300 = pnand %p298, %p299
      %p301 = pneg %p300
      // Predicated region
      $region9: #{tpu_custom_call.1} parent=5 // pred_check
        _
      $region10: #{tpu_custom_call.1} parent=5 // pred_check_branch
        %303 = sbr.rel (%p300) target = $region12
      $region11: #{tpu_custom_call.1} parent=5 // pred_region
        %s304 = ssub.s32 %s24, 1
        // Predicated region
        $region13: #{tpu_custom_call.1} parent=11 // pred_check
          %p305 = pneg %p157
        $region14: #{tpu_custom_call.1} parent=11 // pred_check_branch
          %307 = sbr.rel (%p305) target = $region16
        $region15: #{tpu_custom_call.1} parent=11 // pred_region
          _
        $region16: #{tpu_custom_call.1} parent=11 // pred_fallthru
          _
        // Predicated region
        $region17: #{tpu_custom_call.1} parent=11 // pred_check
          %p308 = pneg %p178
        $region18: #{tpu_custom_call.1} parent=11 // pred_check_branch
          %310 = sbr.rel (%p308) target = $region20
        $region19: #{tpu_custom_call.1} parent=11 // pred_region
          _
        $region20: #{tpu_custom_call.1} parent=11 // pred_fallthru
          _
        // Predicated region
        $region21: #{tpu_custom_call.1} parent=11 // pred_check
          %p311 = pneg %p199
        $region22: #{tpu_custom_call.1} parent=11 // pred_check_branch
          %313 = sbr.rel (%p311) target = $region24
        $region23: #{tpu_custom_call.1} parent=11 // pred_region
          _
        $region24: #{tpu_custom_call.1} parent=11 // pred_fallthru
          _
        // Predicated region
        $region25: #{tpu_custom_call.1} parent=11 // pred_check
          %p314 = pneg %p220
        $region26: #{tpu_custom_call.1} parent=11 // pred_check_branch
          %316 = sbr.rel (%p314) target = $region28
        $region27: #{tpu_custom_call.1} parent=11 // pred_region
          _
        $region28: #{tpu_custom_call.1} parent=11 // pred_fallthru
          _
        // Predicated region
        $region29: #{tpu_custom_call.1} parent=11 // pred_check
          %p317 = pneg %p241
        $region30: #{tpu_custom_call.1} parent=11 // pred_check_branch
          %319 = sbr.rel (%p317) target = $region32
        $region31: #{tpu_custom_call.1} parent=11 // pred_region
          _
        $region32: #{tpu_custom_call.1} parent=11 // pred_fallthru
          _
        // Predicated region
        $region33: #{tpu_custom_call.1} parent=11 // pred_check
          %p320 = pneg %p262
        $region34: #{tpu_custom_call.1} parent=11 // pred_check_branch
          %322 = sbr.rel (%p320) target = $region36
        $region35: #{tpu_custom_call.1} parent=11 // pred_region
          _
        $region36: #{tpu_custom_call.1} parent=11 // pred_fallthru
          _
      $region12: #{tpu_custom_call.1} parent=5 // pred_fallthru
        _
      %p323 = scmp.lt.s32.totalorder %s24, 8
      // Predicated region
      $region37: #{tpu_custom_call.1} parent=5 // pred_check
        %p324 = pneg %p323
      $region38: #{tpu_custom_call.1} parent=5 // pred_check_branch
        %326 = sbr.rel (%p324) target = $region40
      $region39: #{tpu_custom_call.1} parent=5 // pred_region
        // Predicated region
        $region41: #{tpu_custom_call.1} parent=39 // pred_check
          %p327 = pneg %p58
        $region42: #{tpu_custom_call.1} parent=39 // pred_check_branch
          %329 = sbr.rel (%p327) target = $region44
        $region43: #{tpu_custom_call.1} parent=39 // pred_region
          %s330 = sand.u32 %s48, 1
          %s331 = scalar_lea.sflag [#allocation3], %s330
          %s332 = sand.u32 %s48, 1
          %s333 = smul.addr %s332, 64
          %s334 = scalar_lea.vmem [#allocation2], %s333
          %s335 = smul.u32 4, %s32
          %337 = vsyncadd %s331, 0
          %s338 = smul.addr %s335, 2
          %s339 = smul.addr %s31, 32
          %s340 = sadd.s32 %s338, %s339
          %s341 = smul.addr %s340, 8
          %s342 = scalar_lea.hbm %s0, %s341
          %s343 = sshll.u32 %s342, 4
          %s344 = int_to_ptr.hbm [resolvable:$true] %s343
          %s345 = sshll.u32 %s334, 4
          %s346 = int_to_ptr.vmem [resolvable:$true] %s345
          %351 = dma.hbm_to_vmem [thread:$0]  %s344, 1024, %s346, %s331, 128, 128, 8
        $region44: #{tpu_custom_call.1} parent=39 // pred_fallthru
          _
        // Predicated region
        $region45: #{tpu_custom_call.1} parent=39 // pred_check
          %p352 = pneg %p94
        $region46: #{tpu_custom_call.1} parent=39 // pred_check_branch
          %354 = sbr.rel (%p352) target = $region48
        $region47: #{tpu_custom_call.1} parent=39 // pred_region
          %s355 = sand.u32 %s24, 1
          %s356 = scalar_lea.sflag [#allocation6], %s355
          %s357 = sand.u32 %s84, 1
          %s358 = smul.addr %s357, 16
          %s359 = scalar_lea.vmem [#allocation5], %s358
          %s360 = smul.u32 %s32, 4
          %s361 = ssub.s32 %s360, 1
          %p362 = scmp.gt.s32.totalorder %s361, 0
          %s363 = scalar_select %p362, %s361, 0
          %365 = vsyncadd %s356, 0
          %s366 = smul.addr %s363, 2
          %s367 = smul.addr %s31, 32
          %s368 = sadd.s32 %s366, %s367
          %s369 = smul.addr %s368, 8
          %s370 = scalar_lea.hbm %s1, %s369
          %s371 = sshll.u32 %s370, 4
          %s372 = int_to_ptr.hbm [resolvable:$true] %s371
          %s373 = sshll.u32 %s359, 4
          %s374 = int_to_ptr.vmem [resolvable:$true] %s373
          %379 = dma.hbm_to_vmem [thread:$0]  %s372, 256, %s374, %s356, 128, 128, 8
        $region48: #{tpu_custom_call.1} parent=39 // pred_fallthru
          _
        // Predicated region
        $region49: #{tpu_custom_call.1} parent=39 // pred_check
          %p380 = pneg %p130
        $region50: #{tpu_custom_call.1} parent=39 // pred_check_branch
          %382 = sbr.rel (%p380) target = $region52
        $region51: #{tpu_custom_call.1} parent=39 // pred_region
          %s383 = sand.u32 %s24, 1
          %s384 = scalar_lea.sflag [#allocation6], %s383
          %s385 = sand.u32 %s120, 1
          %s386 = smul.addr %s385, 16
          %s387 = scalar_lea.vmem [#allocation7], %s386
          %s388 = smul.u32 %s32, 4
          %s389 = sadd.s32 %s388, 4
          %p390 = scmp.lt.s32.totalorder %s389, 15
          %s391 = scalar_select %p390, %s389, 15
          %393 = vsyncadd %s384, 0
          %s394 = smul.addr %s391, 2
          %s395 = smul.addr %s31, 32
          %s396 = sadd.s32 %s394, %s395
          %s397 = smul.addr %s396, 8
          %s398 = scalar_lea.hbm %s2, %s397
          %s399 = sshll.u32 %s398, 4
          %s400 = int_to_ptr.hbm [resolvable:$true] %s399
          %s401 = sshll.u32 %s387, 4
          %s402 = int_to_ptr.vmem [resolvable:$true] %s401
          %407 = dma.hbm_to_vmem [thread:$0]  %s400, 256, %s402, %s384, 128, 128, 8
        $region52: #{tpu_custom_call.1} parent=39 // pred_fallthru
          _
      $region40: #{tpu_custom_call.1} parent=5 // pred_fallthru
        _
      %p408 = scmp.le.s32.totalorder 1, %s24
      %p409 = scmp.lt.s32.totalorder %s24, 9
      %p410 = pnand %p408, %p409
      %p411 = pneg %p410
      // Predicated region
      $region53: #{tpu_custom_call.1} parent=5 // pred_check
        _
      $region54: #{tpu_custom_call.1} parent=5 // pred_check_branch
        %413 = sbr.rel (%p410) target = $region56
      $region55: #{tpu_custom_call.1} parent=5 // pred_region
        %s414 = ssub.s32 %s24, 1
        %s415 = sand.u32 %s51, 1
        %s416 = scalar_lea.sflag [#allocation3], %s415
        %s417 = sand.u32 %s51, 1
        %s418 = smul.addr %s417, 64
        %s419 = scalar_lea.vmem [#allocation2], %s418
        // Predicated region
        $region57: #{tpu_custom_call.1} parent=55 // pred_check
          %p420 = pneg %p64
        $region58: #{tpu_custom_call.1} parent=55 // pred_check_branch
          %422 = sbr.rel (%p420) target = $region60
        $region59: #{tpu_custom_call.1} parent=55 // pred_region
          %424 = dma.done %s416, 1024
        $region60: #{tpu_custom_call.1} parent=55 // pred_fallthru
          _
        %s425 = sand.u32 %s29, 1
        %s426 = scalar_lea.sflag [#allocation6], %s425
        %s427 = sand.u32 %s87, 1
        %s428 = smul.addr %s427, 16
        %s429 = scalar_lea.vmem [#allocation5], %s428
        // Predicated region
        $region61: #{tpu_custom_call.1} parent=55 // pred_check
          %p430 = pneg %p100
        $region62: #{tpu_custom_call.1} parent=55 // pred_check_branch
          %432 = sbr.rel (%p430) target = $region64
        $region63: #{tpu_custom_call.1} parent=55 // pred_region
          %434 = dma.done %s426, 256
        $region64: #{tpu_custom_call.1} parent=55 // pred_fallthru
          _
        %s435 = sand.u32 %s29, 1
        %s436 = scalar_lea.sflag [#allocation6], %s435
        %s437 = sand.u32 %s123, 1
        %s438 = smul.addr %s437, 16
        %s439 = scalar_lea.vmem [#allocation7], %s438
        // Predicated region
        $region65: #{tpu_custom_call.1} parent=55 // pred_check
          %p440 = pneg %p136
        $region66: #{tpu_custom_call.1} parent=55 // pred_check_branch
          %442 = sbr.rel (%p440) target = $region68
        $region67: #{tpu_custom_call.1} parent=55 // pred_region
          %444 = dma.done %s436, 256
        $region68: #{tpu_custom_call.1} parent=55 // pred_fallthru
          _
        %s445 = sand.u32 %s51, 1
        %s446 = scalar_lea.sflag [#allocation3], %s445
        %s447 = sand.u32 %s51, 1
        %s448 = smul.addr %s447, 64
        %s449 = scalar_lea.vmem [#allocation2], %s448
        %p450 = pneg %p64
        %p451 = pneg %p61
        %s452 = sand.u32 %s29, 1
        %s453 = scalar_lea.sflag [#allocation6], %s452
        %s454 = sand.u32 %s87, 1
        %s455 = smul.addr %s454, 16
        %s456 = scalar_lea.vmem [#allocation5], %s455
        %p457 = pneg %p100
        %p458 = pneg %p97
        %s459 = sand.u32 %s29, 1
        %s460 = scalar_lea.sflag [#allocation6], %s459
        %s461 = sand.u32 %s123, 1
        %s462 = smul.addr %s461, 16
        %s463 = scalar_lea.vmem [#allocation7], %s462
        %p464 = pneg %p136
        %p465 = pneg %p133
        %p466 = pneg %p157
        %p467 = pneg %p154
        %p468 = pneg %p178
        %p469 = pneg %p175
        %p470 = pneg %p199
        %p471 = pneg %p196
        %p472 = pneg %p220
        %p473 = pneg %p217
        %p474 = pneg %p241
        %p475 = pneg %p238
        %p476 = pneg %p262
        %p477 = pneg %p259
        %p478 = pneg %p290
        %p479 = pneg %p287
        %s480 = sand.u32 %s277, 1
        %s481 = scalar_lea.sflag [#allocation4], %s480
        %s482 = sand.u32 %s277, 1
        %s483 = smul.addr %s482, 64
        %s484 = scalar_lea.vmem [#allocation8], %s483
        %s485 = smul.u32 4, %s34
        %s486 = smul.u32 %s34, 4
        %s487 = ssub.s32 %s486, 1
        %p488 = scmp.gt.s32.totalorder %s487, 0
        %s489 = scalar_select %p488, %s487, 0
        %s490 = smul.u32 %s34, 4
        %s491 = sadd.s32 %s490, 4
        %p492 = scmp.lt.s32.totalorder %s491, 15
        %s493 = scalar_select %p492, %s491, 15
        %s494 = smul.u32 4, %s34
        %v496 = vld [vmem:[%s419] sm:$0xff]
        %v497 = vld [vmem:[%s419 + $0x8] sm:$0xff]
        %v498 = vld [vmem:[%s419 + $0x10] sm:$0xff]
        %v499 = vld [vmem:[%s419 + $0x18] sm:$0xff]
        %v500 = vld [vmem:[%s419 + $0x20] sm:$0xff]
        %v501 = vld [vmem:[%s419 + $0x28] sm:$0xff]
        %v502 = vld [vmem:[%s419 + $0x30] sm:$0xff]
        %v503 = vld [vmem:[%s419 + $0x38] sm:$0xff]
        %v504 = vld [vmem:[%s429] sm:$0xff]
        %v505 = vld [vmem:[%s429 + $0x8] sm:$0xff]
        %v506 = vld [vmem:[%s439] sm:$0xff]
        %v507 = vld [vmem:[%s439 + $0x8] sm:$0xff]
        %v508 = vpack.c.bf16 %v505, %v504
        %v509 = vpack.c.bf16 %v497, %v496
        %v510 = vpack.c.bf16 %v499, %v498
        %v511 = vpack.c.bf16 %v501, %v500
        %v512 = vpack.c.bf16 %v503, %v502
        %v513 = vpack.c.bf16 %v507, %v506
        %v514 = vld [vmem:[%s3] sm:$0xff]
        %v515 = vld [vmem:[%s3 + $0x8] sm:$0xff]
        %v516 = vld [vmem:[%s3 + $0x10] sm:$0xff]
        %v517 = vld [vmem:[%s3 + $0x18] sm:$0xff]
        %v518 = vld [vmem:[%s3 + $0x20] sm:$0xff]
        %v519 = vld [vmem:[%s3 + $0x28] sm:$0xff]
        %v520 = vld [vmem:[%s3 + $0x30] sm:$0xff]
        %v521 = vld [vmem:[%s3 + $0x38] sm:$0xff]
        %v522 = vld [vmem:[%s4] sm:$0x3]
        %v524 = vperm.slane %v522, 0
        %v525 = vperm.slane %v522, 1
        %v536 = vunpack.c.l.b16 %v514
        %v537 = vunpack.c.h.b16 %v514
        %v538 = vunpack.c.l.b16 %v515
        %v539 = vunpack.c.h.b16 %v515
        %v540 = vunpack.c.l.b16 %v516
        %v541 = vunpack.c.h.b16 %v516
        %v542 = vunpack.c.l.b16 %v517
        %v543 = vunpack.c.h.b16 %v517
        %v544 = vunpack.c.l.b16 %v518
        %v545 = vunpack.c.h.b16 %v518
        %v546 = vunpack.c.l.b16 %v519
        %v547 = vunpack.c.h.b16 %v519
        %v548 = vunpack.c.l.b16 %v520
        %v549 = vunpack.c.h.b16 %v520
        %v550 = vunpack.c.l.b16 %v521
        %v551 = vunpack.c.h.b16 %v521
        %v552 = vpack.c.b16 %v538, %v536
        %v553 = vpack.c.b16 %v539, %v537
        %v554 = vpack.c.b16 %v542, %v540
        %v555 = vpack.c.b16 %v543, %v541
        %v556 = vpack.c.b16 %v546, %v544
        %v557 = vpack.c.b16 %v547, %v545
        %v558 = vpack.c.b16 %v550, %v548
        %v559 = vpack.c.b16 %v551, %v549
        %vm568 = vcmask 523264
        %v570 = vsel %vm568, %v508, 0
        %v573 = vsel %vm568, %v509, 0
        %v576 = vsel %vm568, %v510, 0
        %v579 = vsel %vm568, %v511, 0
        %v582 = vsel %vm568, %v512, 0
        %v585 = vsel %vm568, %v513, 0
        %587 = vmatpush.bf16.msra.mxu0 0
        %588 = vmatpush.bf16.msra.mxu0 0
        %589 = vmatpush.bf16.msra.mxu0 0
        %590 = vmatpush.bf16.msra.mxu0 0
        %591 = vmatpush.bf16.msra.mxu0 %v558
        %592 = vmatpush.bf16.msra.mxu0 %v556
        %593 = vmatpush.bf16.msra.mxu0 %v554
        %594 = vmatpush.bf16.msra.mxu0 %v552
        %595 = vmatmul.bf16.gmra.mxu0 %v570
        %v596 = vpop.f32.mrf.mxu0
        %v597 = vadd.f32 %v524, %v596
        %v598 = vpop.f32.mrf.mxu0
        %v599 = vadd.f32 %v524, %v598
        %600 = vmatmul.bf16.gmra.mxu0 %v573
        %v601 = vpop.f32.mrf.mxu0
        %v602 = vadd.f32 %v524, %v601
        %v603 = vpop.f32.mrf.mxu0
        %v604 = vadd.f32 %v524, %v603
        %605 = vmatmul.bf16.gmra.mxu0 %v576
        %v606 = vpop.f32.mrf.mxu0
        %v607 = vadd.f32 %v524, %v606
        %v608 = vpop.f32.mrf.mxu0
        %v609 = vadd.f32 %v524, %v608
        %610 = vmatmul.bf16.gmra.mxu0 %v579
        %v611 = vpop.f32.mrf.mxu0
        %v612 = vadd.f32 %v524, %v611
        %v613 = vpop.f32.mrf.mxu0
        %v614 = vadd.f32 %v524, %v613
        %615 = vmatmul.bf16.gmra.mxu0 %v582
        %v616 = vpop.f32.mrf.mxu0
        %v617 = vadd.f32 %v524, %v616
        %v618 = vpop.f32.mrf.mxu0
        %v619 = vadd.f32 %v524, %v618
        %620 = vmatmul.bf16.gmra.mxu0 %v585
        %v621 = vpop.f32.mrf.mxu0
        %v622 = vadd.f32 %v524, %v621
        %v623 = vpop.f32.mrf.mxu0
        %v624 = vadd.f32 %v524, %v623
        %625 = vdwg.mxu0
        %626 = vmatpush.bf16.msra.mxu0 0
        %627 = vmatpush.bf16.msra.mxu0 0
        %628 = vmatpush.bf16.msra.mxu0 0
        %629 = vmatpush.bf16.msra.mxu0 0
        %630 = vmatpush.bf16.msra.mxu0 %v559
        %631 = vmatpush.bf16.msra.mxu0 %v557
        %632 = vmatpush.bf16.msra.mxu0 %v555
        %633 = vmatpush.bf16.msra.mxu0 %v553
        %634 = vmatmul.bf16.gmra.mxu0 %v570
        %v635 = vpop.f32.mrf.mxu0
        %v636 = vadd.f32 %v525, %v635
        %v637 = vpop.f32.mrf.mxu0
        %v638 = vadd.f32 %v525, %v637
        %639 = vmatmul.bf16.gmra.mxu0 %v573
        %v640 = vpop.f32.mrf.mxu0
        %v641 = vadd.f32 %v525, %v640
        %v642 = vpop.f32.mrf.mxu0
        %v643 = vadd.f32 %v525, %v642
        %644 = vmatmul.bf16.gmra.mxu0 %v576
        %v645 = vpop.f32.mrf.mxu0
        %v646 = vadd.f32 %v525, %v645
        %v647 = vpop.f32.mrf.mxu0
        %v648 = vadd.f32 %v525, %v647
        %649 = vmatmul.bf16.gmra.mxu0 %v579
        %v650 = vpop.f32.mrf.mxu0
        %v651 = vadd.f32 %v525, %v650
        %v652 = vpop.f32.mrf.mxu0
        %v653 = vadd.f32 %v525, %v652
        %654 = vmatmul.bf16.gmra.mxu0 %v582
        %v655 = vpop.f32.mrf.mxu0
        %v656 = vadd.f32 %v525, %v655
        %v657 = vpop.f32.mrf.mxu0
        %v658 = vadd.f32 %v525, %v657
        %659 = vmatmul.bf16.gmra.mxu0 %v585
        %v660 = vpop.f32.mrf.mxu0
        %v661 = vadd.f32 %v525, %v660
        %v662 = vpop.f32.mrf.mxu0
        %v663 = vadd.f32 %v525, %v662
        %664 = vdwg.mxu0
        %v665 = vlaneseq
        %v666 = vshrl.u32 %v665, 7
        %v667 = vadd.s32 %v666, 8
        %v668 = vadd.s32 %v666, 16
        %v669 = vadd.s32 %v666, 24
        %v670 = vadd.s32 %v666, 32
        %v671 = vadd.s32 %v666, 40
        %v672 = vadd.s32 %v666, 48
        %v673 = vadd.s32 %v666, 56
        %p674 = scmp.gt.s32.totalorder %s34, 0
        %vm675 = vcmp.ge.s32.totalorder %v666, 16
        %vm676 = vcmp.ge.s32.totalorder %v667, 16
        %vm677 = vcmp.ge.s32.totalorder %v668, 16
        %vm678 = vcmp.ge.s32.totalorder %v669, 16
        %vm679 = vcmp.ge.s32.totalorder %v670, 16
        %vm680 = vcmp.ge.s32.totalorder %v671, 16
        %vm681 = vcmp.ge.s32.totalorder %v672, 16
        %vm682 = vcmp.ge.s32.totalorder %v673, 16
        %s683 = scalar_select %p674, 1, 0
        %v684 = vstv %s683
        %vm685 = vcmp.eq.s32.totalorder %v684, 1
        %vm686 = vmor %vm685, %vm675
        %vm687 = vmor %vm685, %vm676
        %vm688 = vmor %vm685, %vm677
        %vm689 = vmor %vm685, %vm678
        %vm690 = vmor %vm685, %vm679
        %vm691 = vmor %vm685, %vm680
        %vm692 = vmor %vm685, %vm681
        %vm693 = vmor %vm685, %vm682
        %v694 = vsel %vm686, 1, 0
        %v695 = vsel %vm687, 1, 0
        %v696 = vsel %vm688, 1, 0
        %v697 = vsel %vm689, 1, 0
        %v698 = vsel %vm690, 1, 0
        %v699 = vsel %vm691, 1, 0
        %v700 = vsel %vm692, 1, 0
        %v701 = vsel %vm693, 1, 0
        %vm702 = vcmp.eq.s32.totalorder %v694, 1
        %vm703 = vcmp.eq.s32.totalorder %v695, 1
        %vm704 = vcmp.eq.s32.totalorder %v696, 1
        %vm705 = vcmp.eq.s32.totalorder %v697, 1
        %vm706 = vcmp.eq.s32.totalorder %v698, 1
        %vm707 = vcmp.eq.s32.totalorder %v699, 1
        %vm708 = vcmp.eq.s32.totalorder %v700, 1
        %vm709 = vcmp.eq.s32.totalorder %v701, 1
        %v710 = vsel %vm702, %v597, 0.0
        %v711 = vsel %vm702, %v636, 0.0
        %v712 = vsel %vm703, %v599, 0.0
        %v713 = vsel %vm703, %v638, 0.0
        %v714 = vsel %vm704, %v602, 0.0
        %v715 = vsel %vm704, %v641, 0.0
        %v716 = vsel %vm705, %v604, 0.0
        %v717 = vsel %vm705, %v643, 0.0
        %v718 = vsel %vm706, %v607, 0.0
        %v719 = vsel %vm706, %v646, 0.0
        %v720 = vsel %vm707, %v609, 0.0
        %v721 = vsel %vm707, %v648, 0.0
        %v722 = vsel %vm708, %v612, 0.0
        %v723 = vsel %vm708, %v651, 0.0
        %v724 = vsel %vm709, %v614, 0.0
        %v725 = vsel %vm709, %v653, 0.0
        %p726 = scmp.lt.s32.totalorder %s34, 3
        %vm727 = vcmp.lt.s32.totalorder %v666, 48
        %vm728 = vcmp.lt.s32.totalorder %v667, 48
        %vm729 = vcmp.lt.s32.totalorder %v668, 48
        %vm730 = vcmp.lt.s32.totalorder %v669, 48
        %vm731 = vcmp.lt.s32.totalorder %v670, 48
        %vm732 = vcmp.lt.s32.totalorder %v671, 48
        %vm733 = vcmp.lt.s32.totalorder %v672, 48
        %vm734 = vcmp.lt.s32.totalorder %v673, 48
        %s735 = scalar_select %p726, 1, 0
        %v736 = vstv %s735
        %vm737 = vcmp.eq.s32.totalorder %v736, 1
        %vm738 = vmor %vm737, %vm727
        %vm739 = vmor %vm737, %vm728
        %vm740 = vmor %vm737, %vm729
        %vm741 = vmor %vm737, %vm730
        %vm742 = vmor %vm737, %vm731
        %vm743 = vmor %vm737, %vm732
        %vm744 = vmor %vm737, %vm733
        %vm745 = vmor %vm737, %vm734
        %v746 = vsel %vm738, 1, 0
        %v747 = vsel %vm739, 1, 0
        %v748 = vsel %vm740, 1, 0
        %v749 = vsel %vm741, 1, 0
        %v750 = vsel %vm742, 1, 0
        %v751 = vsel %vm743, 1, 0
        %v752 = vsel %vm744, 1, 0
        %v753 = vsel %vm745, 1, 0
        %vm754 = vcmp.eq.s32.totalorder %v746, 1
        %vm755 = vcmp.eq.s32.totalorder %v747, 1
        %vm756 = vcmp.eq.s32.totalorder %v748, 1
        %vm757 = vcmp.eq.s32.totalorder %v749, 1
        %vm758 = vcmp.eq.s32.totalorder %v750, 1
        %vm759 = vcmp.eq.s32.totalorder %v751, 1
        %vm760 = vcmp.eq.s32.totalorder %v752, 1
        %vm761 = vcmp.eq.s32.totalorder %v753, 1
        %v762 = vsel %vm754, %v607, 0.0
        %v763 = vsel %vm754, %v646, 0.0
        %v764 = vsel %vm755, %v609, 0.0
        %v765 = vsel %vm755, %v648, 0.0
        %v766 = vsel %vm756, %v612, 0.0
        %v767 = vsel %vm756, %v651, 0.0
        %v768 = vsel %vm757, %v614, 0.0
        %v769 = vsel %vm757, %v653, 0.0
        %v770 = vsel %vm758, %v617, 0.0
        %v771 = vsel %vm758, %v656, 0.0
        %v772 = vsel %vm759, %v619, 0.0
        %v773 = vsel %vm759, %v658, 0.0
        %v774 = vsel %vm760, %v622, 0.0
        %v775 = vsel %vm760, %v661, 0.0
        %v776 = vsel %vm761, %v624, 0.0
        %v777 = vsel %vm761, %v663, 0.0
        %v778 = vld [vmem:[%s5] sm:$0xff]
        %v779 = vld [vmem:[%s5 + $0x8] sm:$0xff]
        %v780 = vld [vmem:[%s5 + $0x10] sm:$0x1]
        %v781 = vld [vmem:[%s5 + $0x18] sm:$0x1]
        %v782 = vld [vmem:[%s6] sm:$0x3]
        %v783 = vperm.slane %v778, 0
        %v784 = vperm.slane %v779, 0
        %v785 = vmul.f32 %v710, %v783
        %v786 = vmul.f32 %v711, %v784
        %v787 = vmul.f32 %v712, %v783
        %v788 = vmul.f32 %v713, %v784
        %v789 = vmul.f32 %v714, %v783
        %v790 = vmul.f32 %v715, %v784
        %v791 = vmul.f32 %v716, %v783
        %v792 = vmul.f32 %v717, %v784
        %v793 = vmul.f32 %v718, %v783
        %v794 = vmul.f32 %v719, %v784
        %v795 = vmul.f32 %v720, %v783
        %v796 = vmul.f32 %v721, %v784
        %v797 = vmul.f32 %v722, %v783
        %v798 = vmul.f32 %v723, %v784
        %v799 = vmul.f32 %v724, %v783
        %v800 = vmul.f32 %v725, %v784
        %v801 = vperm.slane %v778, 3
        %v802 = vperm.slane %v779, 3
        %v803 = vmul.f32 %v602, %v801
        %v804 = vmul.f32 %v641, %v802
        %v805 = vmul.f32 %v604, %v801
        %v806 = vmul.f32 %v643, %v802
        %v807 = vmul.f32 %v607, %v801
        %v808 = vmul.f32 %v646, %v802
        %v809 = vmul.f32 %v609, %v801
        %v810 = vmul.f32 %v648, %v802
        %v811 = vmul.f32 %v612, %v801
        %v812 = vmul.f32 %v651, %v802
        %v813 = vmul.f32 %v614, %v801
        %v814 = vmul.f32 %v653, %v802
        %v815 = vmul.f32 %v617, %v801
        %v816 = vmul.f32 %v656, %v802
        %v817 = vmul.f32 %v619, %v801
        %v818 = vmul.f32 %v658, %v802
        %v819 = vadd.f32 %v785, %v803
        %v820 = vadd.f32 %v786, %v804
        %v821 = vadd.f32 %v787, %v805
        %v822 = vadd.f32 %v788, %v806
        %v823 = vadd.f32 %v789, %v807
        %v824 = vadd.f32 %v790, %v808
        %v825 = vadd.f32 %v791, %v809
        %v826 = vadd.f32 %v792, %v810
        %v827 = vadd.f32 %v793, %v811
        %v828 = vadd.f32 %v794, %v812
        %v829 = vadd.f32 %v795, %v813
        %v830 = vadd.f32 %v796, %v814
        %v831 = vadd.f32 %v797, %v815
        %v832 = vadd.f32 %v798, %v816
        %v833 = vadd.f32 %v799, %v817
        %v834 = vadd.f32 %v800, %v818
        %v835 = vperm.slane %v778, 6
        %v836 = vperm.slane %v779, 6
        %v837 = vmul.f32 %v762, %v835
        %v838 = vmul.f32 %v763, %v836
        %v839 = vmul.f32 %v764, %v835
        %v840 = vmul.f32 %v765, %v836
        %v841 = vmul.f32 %v766, %v835
        %v842 = vmul.f32 %v767, %v836
        %v843 = vmul.f32 %v768, %v835
        %v844 = vmul.f32 %v769, %v836
        %v845 = vmul.f32 %v770, %v835
        %v846 = vmul.f32 %v771, %v836
        %v847 = vmul.f32 %v772, %v835
        %v848 = vmul.f32 %v773, %v836
        %v849 = vmul.f32 %v774, %v835
        %v850 = vmul.f32 %v775, %v836
        %v851 = vmul.f32 %v776, %v835
        %v852 = vmul.f32 %v777, %v836
        %v853 = vadd.f32 %v819, %v837
        %v854 = vadd.f32 %v820, %v838
        %v855 = vadd.f32 %v821, %v839
        %v856 = vadd.f32 %v822, %v840
        %v857 = vadd.f32 %v823, %v841
        %v858 = vadd.f32 %v824, %v842
        %v859 = vadd.f32 %v825, %v843
        %v860 = vadd.f32 %v826, %v844
        %v861 = vadd.f32 %v827, %v845
        %v862 = vadd.f32 %v828, %v846
        %v863 = vadd.f32 %v829, %v847
        %v864 = vadd.f32 %v830, %v848
        %v865 = vadd.f32 %v831, %v849
        %v866 = vadd.f32 %v832, %v850
        %v867 = vadd.f32 %v833, %v851
        %v868 = vadd.f32 %v834, %v852
        %v869 = vperm.slane %v778, 1
        %v870 = vperm.slane %v779, 1
        %v871 = vmul.f32 %v710, %v869
        %v872 = vmul.f32 %v711, %v870
        %v873 = vmul.f32 %v712, %v869
        %v874 = vmul.f32 %v713, %v870
        %v875 = vmul.f32 %v714, %v869
        %v876 = vmul.f32 %v715, %v870
        %v877 = vmul.f32 %v716, %v869
        %v878 = vmul.f32 %v717, %v870
        %v879 = vmul.f32 %v718, %v869
        %v880 = vmul.f32 %v719, %v870
        %v881 = vmul.f32 %v720, %v869
        %v882 = vmul.f32 %v721, %v870
        %v883 = vmul.f32 %v722, %v869
        %v884 = vmul.f32 %v723, %v870
        %v885 = vmul.f32 %v724, %v869
        %v886 = vmul.f32 %v725, %v870
        %v887 = vperm.slane %v778, 4
        %v888 = vperm.slane %v779, 4
        %v889 = vmul.f32 %v602, %v887
        %v890 = vmul.f32 %v641, %v888
        %v891 = vmul.f32 %v604, %v887
        %v892 = vmul.f32 %v643, %v888
        %v893 = vmul.f32 %v607, %v887
        %v894 = vmul.f32 %v646, %v888
        %v895 = vmul.f32 %v609, %v887
        %v896 = vmul.f32 %v648, %v888
        %v897 = vmul.f32 %v612, %v887
        %v898 = vmul.f32 %v651, %v888
        %v899 = vmul.f32 %v614, %v887
        %v900 = vmul.f32 %v653, %v888
        %v901 = vmul.f32 %v617, %v887
        %v902 = vmul.f32 %v656, %v888
        %v903 = vmul.f32 %v619, %v887
        %v904 = vmul.f32 %v658, %v888
        %v905 = vadd.f32 %v871, %v889
        %v906 = vadd.f32 %v872, %v890
        %v907 = vadd.f32 %v873, %v891
        %v908 = vadd.f32 %v874, %v892
        %v909 = vadd.f32 %v875, %v893
        %v910 = vadd.f32 %v876, %v894
        %v911 = vadd.f32 %v877, %v895
        %v912 = vadd.f32 %v878, %v896
        %v913 = vadd.f32 %v879, %v897
        %v914 = vadd.f32 %v880, %v898
        %v915 = vadd.f32 %v881, %v899
        %v916 = vadd.f32 %v882, %v900
        %v917 = vadd.f32 %v883, %v901
        %v918 = vadd.f32 %v884, %v902
        %v919 = vadd.f32 %v885, %v903
        %v920 = vadd.f32 %v886, %v904
        %v921 = vperm.slane %v778, 7
        %v922 = vperm.slane %v779, 7
        %v923 = vmul.f32 %v762, %v921
        %v924 = vmul.f32 %v763, %v922
        %v925 = vmul.f32 %v764, %v921
        %v926 = vmul.f32 %v765, %v922
        %v927 = vmul.f32 %v766, %v921
        %v928 = vmul.f32 %v767, %v922
        %v929 = vmul.f32 %v768, %v921
        %v930 = vmul.f32 %v769, %v922
        %v931 = vmul.f32 %v770, %v921
        %v932 = vmul.f32 %v771, %v922
        %v933 = vmul.f32 %v772, %v921
        %v934 = vmul.f32 %v773, %v922
        %v935 = vmul.f32 %v774, %v921
        %v936 = vmul.f32 %v775, %v922
        %v937 = vmul.f32 %v776, %v921
        %v938 = vmul.f32 %v777, %v922
        %v939 = vadd.f32 %v905, %v923
        %v940 = vadd.f32 %v906, %v924
        %v941 = vadd.f32 %v907, %v925
        %v942 = vadd.f32 %v908, %v926
        %v943 = vadd.f32 %v909, %v927
        %v944 = vadd.f32 %v910, %v928
        %v945 = vadd.f32 %v911, %v929
        %v946 = vadd.f32 %v912, %v930
        %v947 = vadd.f32 %v913, %v931
        %v948 = vadd.f32 %v914, %v932
        %v949 = vadd.f32 %v915, %v933
        %v950 = vadd.f32 %v916, %v934
        %v951 = vadd.f32 %v917, %v935
        %v952 = vadd.f32 %v918, %v936
        %v953 = vadd.f32 %v919, %v937
        %v954 = vadd.f32 %v920, %v938
        %v955 = vperm.slane %v778, 2
        %v956 = vperm.slane %v779, 2
        %v957 = vmul.f32 %v710, %v955
        %v958 = vmul.f32 %v711, %v956
        %v959 = vmul.f32 %v712, %v955
        %v960 = vmul.f32 %v713, %v956
        %v961 = vmul.f32 %v714, %v955
        %v962 = vmul.f32 %v715, %v956
        %v963 = vmul.f32 %v716, %v955
        %v964 = vmul.f32 %v717, %v956
        %v965 = vmul.f32 %v718, %v955
        %v966 = vmul.f32 %v719, %v956
        %v967 = vmul.f32 %v720, %v955
        %v968 = vmul.f32 %v721, %v956
        %v969 = vmul.f32 %v722, %v955
        %v970 = vmul.f32 %v723, %v956
        %v971 = vmul.f32 %v724, %v955
        %v972 = vmul.f32 %v725, %v956
        %v973 = vperm.slane %v778, 5
        %v974 = vperm.slane %v779, 5
        %v975 = vmul.f32 %v602, %v973
        %v976 = vmul.f32 %v641, %v974
        %v977 = vmul.f32 %v604, %v973
        %v978 = vmul.f32 %v643, %v974
        %v979 = vmul.f32 %v607, %v973
        %v980 = vmul.f32 %v646, %v974
        %v981 = vmul.f32 %v609, %v973
        %v982 = vmul.f32 %v648, %v974
        %v983 = vmul.f32 %v612, %v973
        %v984 = vmul.f32 %v651, %v974
        %v985 = vmul.f32 %v614, %v973
        %v986 = vmul.f32 %v653, %v974
        %v987 = vmul.f32 %v617, %v973
        %v988 = vmul.f32 %v656, %v974
        %v989 = vmul.f32 %v619, %v973
        %v990 = vmul.f32 %v658, %v974
        %v991 = vadd.f32 %v957, %v975
        %v992 = vadd.f32 %v958, %v976
        %v993 = vadd.f32 %v959, %v977
        %v994 = vadd.f32 %v960, %v978
        %v995 = vadd.f32 %v961, %v979
        %v996 = vadd.f32 %v962, %v980
        %v997 = vadd.f32 %v963, %v981
        %v998 = vadd.f32 %v964, %v982
        %v999 = vadd.f32 %v965, %v983
        %v1000 = vadd.f32 %v966, %v984
        %v1001 = vadd.f32 %v967, %v985
        %v1002 = vadd.f32 %v968, %v986
        %v1003 = vadd.f32 %v969, %v987
        %v1004 = vadd.f32 %v970, %v988
        %v1005 = vadd.f32 %v971, %v989
        %v1006 = vadd.f32 %v972, %v990
        %v1007 = vperm.slane %v780, 0
        %v1008 = vperm.slane %v781, 0
        %v1009 = vmul.f32 %v762, %v1007
        %v1010 = vmul.f32 %v763, %v1008
        %v1011 = vmul.f32 %v764, %v1007
        %v1012 = vmul.f32 %v765, %v1008
        %v1013 = vmul.f32 %v766, %v1007
        %v1014 = vmul.f32 %v767, %v1008
        %v1015 = vmul.f32 %v768, %v1007
        %v1016 = vmul.f32 %v769, %v1008
        %v1017 = vmul.f32 %v770, %v1007
        %v1018 = vmul.f32 %v771, %v1008
        %v1019 = vmul.f32 %v772, %v1007
        %v1020 = vmul.f32 %v773, %v1008
        %v1021 = vmul.f32 %v774, %v1007
        %v1022 = vmul.f32 %v775, %v1008
        %v1023 = vmul.f32 %v776, %v1007
        %v1024 = vmul.f32 %v777, %v1008
        %v1025 = vadd.f32 %v991, %v1009
        %v1026 = vadd.f32 %v992, %v1010
        %v1027 = vadd.f32 %v993, %v1011
        %v1028 = vadd.f32 %v994, %v1012
        %v1029 = vadd.f32 %v995, %v1013
        %v1030 = vadd.f32 %v996, %v1014
        %v1031 = vadd.f32 %v997, %v1015
        %v1032 = vadd.f32 %v998, %v1016
        %v1033 = vadd.f32 %v999, %v1017
        %v1034 = vadd.f32 %v1000, %v1018
        %v1035 = vadd.f32 %v1001, %v1019
        %v1036 = vadd.f32 %v1002, %v1020
        %v1037 = vadd.f32 %v1003, %v1021
        %v1038 = vadd.f32 %v1004, %v1022
        %v1039 = vadd.f32 %v1005, %v1023
        %v1040 = vadd.f32 %v1006, %v1024
        %vm1041 = vcmp.lt.s32.totalorder %v666, 0
        %v1042 = vsub.s32 0, %v666
        %v1043 = vsel %vm1041, %v1042, %v666
        %v1044 = vshrl.u32 %v1043, 4
        %v1045 = vand.u32 %v1043, 15
        %v1046 = vsub.s32 0, %v1045
        %v1047 = vsel %vm1041, %v1046, %v1045
        %vm1048 = vcmp.lt.s32.totalorder %v667, 0
        %v1049 = vsub.s32 0, %v667
        %v1050 = vsel %vm1048, %v1049, %v667
        %v1051 = vshrl.u32 %v1050, 4
        %v1052 = vand.u32 %v1050, 15
        %v1053 = vsub.s32 0, %v1052
        %v1054 = vsel %vm1048, %v1053, %v1052
        %vm1055 = vcmp.lt.s32.totalorder %v668, 0
        %v1056 = vsub.s32 0, %v668
        %v1057 = vsel %vm1055, %v1056, %v668
        %v1058 = vshrl.u32 %v1057, 4
        %v1059 = vand.u32 %v1057, 15
        %v1060 = vsub.s32 0, %v1059
        %v1061 = vsel %vm1055, %v1060, %v1059
        %vm1062 = vcmp.lt.s32.totalorder %v669, 0
        %v1063 = vsub.s32 0, %v669
        %v1064 = vsel %vm1062, %v1063, %v669
        %v1065 = vshrl.u32 %v1064, 4
        %v1066 = vand.u32 %v1064, 15
        %v1067 = vsub.s32 0, %v1066
        %v1068 = vsel %vm1062, %v1067, %v1066
        %vm1069 = vcmp.lt.s32.totalorder %v670, 0
        %v1070 = vsub.s32 0, %v670
        %v1071 = vsel %vm1069, %v1070, %v670
        %v1072 = vshrl.u32 %v1071, 4
        %v1073 = vand.u32 %v1071, 15
        %v1074 = vsub.s32 0, %v1073
        %v1075 = vsel %vm1069, %v1074, %v1073
        %vm1076 = vcmp.lt.s32.totalorder %v671, 0
        %v1077 = vsub.s32 0, %v671
        %v1078 = vsel %vm1076, %v1077, %v671
        %v1079 = vshrl.u32 %v1078, 4
        %v1080 = vand.u32 %v1078, 15
        %v1081 = vsub.s32 0, %v1080
        %v1082 = vsel %vm1076, %v1081, %v1080
        %vm1083 = vcmp.lt.s32.totalorder %v672, 0
        %v1084 = vsub.s32 0, %v672
        %v1085 = vsel %vm1083, %v1084, %v672
        %v1086 = vshrl.u32 %v1085, 4
        %v1087 = vand.u32 %v1085, 15
        %v1088 = vsub.s32 0, %v1087
        %v1089 = vsel %vm1083, %v1088, %v1087
        %vm1090 = vcmp.lt.s32.totalorder %v673, 0
        %v1091 = vsub.s32 0, %v673
        %v1092 = vsel %vm1090, %v1091, %v673
        %v1093 = vshrl.u32 %v1092, 4
        %v1094 = vand.u32 %v1092, 15
        %v1095 = vsub.s32 0, %v1094
        %v1096 = vsel %vm1090, %v1095, %v1094
        %vm1097 = vcmp.ne.s32.totalorder %v1047, 0
        %vm1098 = vcmp.ne.s32.totalorder %v1054, 0
        %vm1099 = vcmp.ne.s32.totalorder %v1061, 0
        %vm1100 = vcmp.ne.s32.totalorder %v1068, 0
        %vm1101 = vcmp.ne.s32.totalorder %v1075, 0
        %vm1102 = vcmp.ne.s32.totalorder %v1082, 0
        %vm1103 = vcmp.ne.s32.totalorder %v1089, 0
        %vm1104 = vcmp.ne.s32.totalorder %v1096, 0
        %vm1105 = vcmp.lt.s32.totalorder %v1047, 0
        %vm1106 = vcmp.lt.s32.totalorder %v1054, 0
        %vm1107 = vcmp.lt.s32.totalorder %v1061, 0
        %vm1108 = vcmp.lt.s32.totalorder %v1068, 0
        %vm1109 = vcmp.lt.s32.totalorder %v1075, 0
        %vm1110 = vcmp.lt.s32.totalorder %v1082, 0
        %vm1111 = vcmp.lt.s32.totalorder %v1089, 0
        %vm1112 = vcmp.lt.s32.totalorder %v1096, 0
        %vm1113 = vmand %vm1105, %vm1097
        %vm1114 = vmand %vm1106, %vm1098
        %vm1115 = vmand %vm1107, %vm1099
        %vm1116 = vmand %vm1108, %vm1100
        %vm1117 = vmand %vm1109, %vm1101
        %vm1118 = vmand %vm1110, %vm1102
        %vm1119 = vmand %vm1111, %vm1103
        %vm1120 = vmand %vm1112, %vm1104
        %v1121 = vadd.s32 %v1047, 16
        %v1122 = vadd.s32 %v1054, 16
        %v1123 = vadd.s32 %v1061, 16
        %v1124 = vadd.s32 %v1068, 16
        %v1125 = vadd.s32 %v1075, 16
        %v1126 = vadd.s32 %v1082, 16
        %v1127 = vadd.s32 %v1089, 16
        %v1128 = vadd.s32 %v1096, 16
        %v1129 = vsel %vm1113, %v1121, %v1047
        %v1130 = vsel %vm1114, %v1122, %v1054
        %v1131 = vsel %vm1115, %v1123, %v1061
        %v1132 = vsel %vm1116, %v1124, %v1068
        %v1133 = vsel %vm1117, %v1125, %v1075
        %v1134 = vsel %vm1118, %v1126, %v1082
        %v1135 = vsel %vm1119, %v1127, %v1089
        %v1136 = vsel %vm1120, %v1128, %v1096
        %vm1137 = vcmp.gt.s32.totalorder %v1129, 0
        %vm1138 = vcmp.gt.s32.totalorder %v1130, 0
        %vm1139 = vcmp.gt.s32.totalorder %v1131, 0
        %vm1140 = vcmp.gt.s32.totalorder %v1132, 0
        %vm1141 = vcmp.gt.s32.totalorder %v1133, 0
        %vm1142 = vcmp.gt.s32.totalorder %v1134, 0
        %vm1143 = vcmp.gt.s32.totalorder %v1135, 0
        %vm1144 = vcmp.gt.s32.totalorder %v1136, 0
        %v1145 = vrot.slane %v853, 7
        %v1146 = vrot.slane %v854, 7
        %v1147 = vrot.slane %v855, 7
        %v1148 = vrot.slane %v856, 7
        %v1149 = vrot.slane %v857, 7
        %v1150 = vrot.slane %v858, 7
        %v1151 = vrot.slane %v859, 7
        %v1152 = vrot.slane %v860, 7
        %v1153 = vrot.slane %v861, 7
        %v1154 = vrot.slane %v862, 7
        %v1155 = vrot.slane %v863, 7
        %v1156 = vrot.slane %v864, 7
        %v1157 = vrot.slane %v865, 7
        %v1158 = vrot.slane %v866, 7
        %v1159 = vrot.slane %v867, 7
        %v1160 = vrot.slane %v868, 7
        %vm1161 = vcmp.lt.s32.totalorder %v666, 1
        %v1162 = vsel %vm1161, %v1157, %v1159
        %v1163 = vsel %vm1161, %v1158, %v1160
        %v1164 = vsel %vm1161, %v1155, %v1157
        %v1165 = vsel %vm1161, %v1156, %v1158
        %v1166 = vsel %vm1161, %v1153, %v1155
        %v1167 = vsel %vm1161, %v1154, %v1156
        %v1168 = vsel %vm1161, %v1151, %v1153
        %v1169 = vsel %vm1161, %v1152, %v1154
        %v1170 = vsel %vm1161, %v1149, %v1151
        %v1171 = vsel %vm1161, %v1150, %v1152
        %v1172 = vsel %vm1161, %v1147, %v1149
        %v1173 = vsel %vm1161, %v1148, %v1150
        %v1174 = vsel %vm1161, %v1145, %v1147
        %v1175 = vsel %vm1161, %v1146, %v1148
        %v1176 = vsel %vm1161, %v1159, %v1145
        %v1177 = vsel %vm1161, %v1160, %v1146
        %v1178 = vsel %vm1137, 1, 0
        %v1179 = vsel %vm1138, 1, 0
        %v1180 = vsel %vm1139, 1, 0
        %v1181 = vsel %vm1140, 1, 0
        %v1182 = vsel %vm1141, 1, 0
        %v1183 = vsel %vm1142, 1, 0
        %v1184 = vsel %vm1143, 1, 0
        %v1185 = vsel %vm1144, 1, 0
        %vm1186 = vcmp.eq.s32.totalorder %v1178, 1
        %vm1187 = vcmp.eq.s32.totalorder %v1179, 1
        %vm1188 = vcmp.eq.s32.totalorder %v1180, 1
        %vm1189 = vcmp.eq.s32.totalorder %v1181, 1
        %vm1190 = vcmp.eq.s32.totalorder %v1182, 1
        %vm1191 = vcmp.eq.s32.totalorder %v1183, 1
        %vm1192 = vcmp.eq.s32.totalorder %v1184, 1
        %vm1193 = vcmp.eq.s32.totalorder %v1185, 1
        %v1194 = vsel %vm1186, %v1176, 0.0
        %v1195 = vsel %vm1186, %v1177, 0.0
        %v1196 = vsel %vm1187, %v1174, 0.0
        %v1197 = vsel %vm1187, %v1175, 0.0
        %v1198 = vsel %vm1188, %v1172, 0.0
        %v1199 = vsel %vm1188, %v1173, 0.0
        %v1200 = vsel %vm1189, %v1170, 0.0
        %v1201 = vsel %vm1189, %v1171, 0.0
        %v1202 = vsel %vm1190, %v1168, 0.0
        %v1203 = vsel %vm1190, %v1169, 0.0
        %v1204 = vsel %vm1191, %v1166, 0.0
        %v1205 = vsel %vm1191, %v1167, 0.0
        %v1206 = vsel %vm1192, %v1164, 0.0
        %v1207 = vsel %vm1192, %v1165, 0.0
        %v1208 = vsel %vm1193, %v1162, 0.0
        %v1209 = vsel %vm1193, %v1163, 0.0
        %vm1210 = vcmp.lt.s32.totalorder %v1129, 15
        %vm1211 = vcmp.lt.s32.totalorder %v1130, 15
        %vm1212 = vcmp.lt.s32.totalorder %v1131, 15
        %vm1213 = vcmp.lt.s32.totalorder %v1132, 15
        %vm1214 = vcmp.lt.s32.totalorder %v1133, 15
        %vm1215 = vcmp.lt.s32.totalorder %v1134, 15
        %vm1216 = vcmp.lt.s32.totalorder %v1135, 15
        %vm1217 = vcmp.lt.s32.totalorder %v1136, 15
        %v1218 = vrot.slane %v1025, 1
        %v1219 = vrot.slane %v1026, 1
        %v1220 = vrot.slane %v1027, 1
        %v1221 = vrot.slane %v1028, 1
        %v1222 = vrot.slane %v1029, 1
        %v1223 = vrot.slane %v1030, 1
        %v1224 = vrot.slane %v1031, 1
        %v1225 = vrot.slane %v1032, 1
        %v1226 = vrot.slane %v1033, 1
        %v1227 = vrot.slane %v1034, 1
        %v1228 = vrot.slane %v1035, 1
        %v1229 = vrot.slane %v1036, 1
        %v1230 = vrot.slane %v1037, 1
        %v1231 = vrot.slane %v1038, 1
        %v1232 = vrot.slane %v1039, 1
        %v1233 = vrot.slane %v1040, 1
        %vm1234 = vcmp.lt.s32.totalorder %v666, 7
        %v1235 = vsel %vm1234, %v1230, %v1232
        %v1236 = vsel %vm1234, %v1231, %v1233
        %v1237 = vsel %vm1234, %v1228, %v1230
        %v1238 = vsel %vm1234, %v1229, %v1231
        %v1239 = vsel %vm1234, %v1226, %v1228
        %v1240 = vsel %vm1234, %v1227, %v1229
        %v1241 = vsel %vm1234, %v1224, %v1226
        %v1242 = vsel %vm1234, %v1225, %v1227
        %v1243 = vsel %vm1234, %v1222, %v1224
        %v1244 = vsel %vm1234, %v1223, %v1225
        %v1245 = vsel %vm1234, %v1220, %v1222
        %v1246 = vsel %vm1234, %v1221, %v1223
        %v1247 = vsel %vm1234, %v1218, %v1220
        %v1248 = vsel %vm1234, %v1219, %v1221
        %v1249 = vsel %vm1234, %v1232, %v1218
        %v1250 = vsel %vm1234, %v1233, %v1219
        %v1251 = vsel %vm1210, 1, 0
        %v1252 = vsel %vm1211, 1, 0
        %v1253 = vsel %vm1212, 1, 0
        %v1254 = vsel %vm1213, 1, 0
        %v1255 = vsel %vm1214, 1, 0
        %v1256 = vsel %vm1215, 1, 0
        %v1257 = vsel %vm1216, 1, 0
        %v1258 = vsel %vm1217, 1, 0
        %vm1259 = vcmp.eq.s32.totalorder %v1251, 1
        %vm1260 = vcmp.eq.s32.totalorder %v1252, 1
        %vm1261 = vcmp.eq.s32.totalorder %v1253, 1
        %vm1262 = vcmp.eq.s32.totalorder %v1254, 1
        %vm1263 = vcmp.eq.s32.totalorder %v1255, 1
        %vm1264 = vcmp.eq.s32.totalorder %v1256, 1
        %vm1265 = vcmp.eq.s32.totalorder %v1257, 1
        %vm1266 = vcmp.eq.s32.totalorder %v1258, 1
        %v1267 = vsel %vm1259, %v1247, 0.0
        %v1268 = vsel %vm1259, %v1248, 0.0
        %v1269 = vsel %vm1260, %v1245, 0.0
        %v1270 = vsel %vm1260, %v1246, 0.0
        %v1271 = vsel %vm1261, %v1243, 0.0
        %v1272 = vsel %vm1261, %v1244, 0.0
        %v1273 = vsel %vm1262, %v1241, 0.0
        %v1274 = vsel %vm1262, %v1242, 0.0
        %v1275 = vsel %vm1263, %v1239, 0.0
        %v1276 = vsel %vm1263, %v1240, 0.0
        %v1277 = vsel %vm1264, %v1237, 0.0
        %v1278 = vsel %vm1264, %v1238, 0.0
        %v1279 = vsel %vm1265, %v1235, 0.0
        %v1280 = vsel %vm1265, %v1236, 0.0
        %v1281 = vsel %vm1266, %v1249, 0.0
        %v1282 = vsel %vm1266, %v1250, 0.0
        %v1283 = vadd.f32 %v939, %v1194
        %v1284 = vadd.f32 %v940, %v1195
        %v1285 = vadd.f32 %v941, %v1196
        %v1286 = vadd.f32 %v942, %v1197
        %v1287 = vadd.f32 %v943, %v1198
        %v1288 = vadd.f32 %v944, %v1199
        %v1289 = vadd.f32 %v945, %v1200
        %v1290 = vadd.f32 %v946, %v1201
        %v1291 = vadd.f32 %v947, %v1202
        %v1292 = vadd.f32 %v948, %v1203
        %v1293 = vadd.f32 %v949, %v1204
        %v1294 = vadd.f32 %v950, %v1205
        %v1295 = vadd.f32 %v951, %v1206
        %v1296 = vadd.f32 %v952, %v1207
        %v1297 = vadd.f32 %v953, %v1208
        %v1298 = vadd.f32 %v954, %v1209
        %v1299 = vadd.f32 %v1283, %v1267
        %v1300 = vadd.f32 %v1284, %v1268
        %v1301 = vadd.f32 %v1285, %v1269
        %v1302 = vadd.f32 %v1286, %v1270
        %v1303 = vadd.f32 %v1287, %v1271
        %v1304 = vadd.f32 %v1288, %v1272
        %v1305 = vadd.f32 %v1289, %v1273
        %v1306 = vadd.f32 %v1290, %v1274
        %v1307 = vadd.f32 %v1291, %v1275
        %v1308 = vadd.f32 %v1292, %v1276
        %v1309 = vadd.f32 %v1293, %v1277
        %v1310 = vadd.f32 %v1294, %v1278
        %v1311 = vadd.f32 %v1295, %v1279
        %v1312 = vadd.f32 %v1296, %v1280
        %v1313 = vadd.f32 %v1297, %v1281
        %v1314 = vadd.f32 %v1298, %v1282
        %v1316 = vperm.slane %v782, 0
        %v1317 = vperm.slane %v782, 1
        %v1320 = vadd.f32 %v1299, %v1316
        %v1321 = vadd.f32 %v1300, %v1317
        %v1322 = vadd.f32 %v1301, %v1316
        %v1323 = vadd.f32 %v1302, %v1317
        %v1324 = vadd.f32 %v1303, %v1316
        %v1325 = vadd.f32 %v1304, %v1317
        %v1326 = vadd.f32 %v1305, %v1316
        %v1327 = vadd.f32 %v1306, %v1317
        %v1328 = vadd.f32 %v1307, %v1316
        %v1329 = vadd.f32 %v1308, %v1317
        %v1330 = vadd.f32 %v1309, %v1316
        %v1331 = vadd.f32 %v1310, %v1317
        %v1332 = vadd.f32 %v1311, %v1316
        %v1333 = vadd.f32 %v1312, %v1317
        %v1334 = vadd.f32 %v1313, %v1316
        %v1335 = vadd.f32 %v1314, %v1317
        %v1336 = vmul.f32 %v1320, 0.5
        %v1337 = vmul.f32 %v1321, 0.5
        %v1338 = vmul.f32 %v1322, 0.5
        %v1339 = vmul.f32 %v1323, 0.5
        %v1340 = vmul.f32 %v1324, 0.5
        %v1341 = vmul.f32 %v1325, 0.5
        %v1342 = vmul.f32 %v1326, 0.5
        %v1343 = vmul.f32 %v1327, 0.5
        %v1344 = vmul.f32 %v1328, 0.5
        %v1345 = vmul.f32 %v1329, 0.5
        %v1346 = vmul.f32 %v1330, 0.5
        %v1347 = vmul.f32 %v1331, 0.5
        %v1348 = vmul.f32 %v1332, 0.5
        %v1349 = vmul.f32 %v1333, 0.5
        %v1350 = vmul.f32 %v1334, 0.5
        %v1351 = vmul.f32 %v1335, 0.5
        %v1352 = vmul.f32 %v1320, 0.70710677
        %v1353 = vmul.f32 %v1321, 0.70710677
        %v1354 = vmul.f32 %v1322, 0.70710677
        %v1355 = vmul.f32 %v1323, 0.70710677
        %v1356 = vmul.f32 %v1324, 0.70710677
        %v1357 = vmul.f32 %v1325, 0.70710677
        %v1358 = vmul.f32 %v1326, 0.70710677
        %v1359 = vmul.f32 %v1327, 0.70710677
        %v1360 = vmul.f32 %v1328, 0.70710677
        %v1361 = vmul.f32 %v1329, 0.70710677
        %v1362 = vmul.f32 %v1330, 0.70710677
        %v1363 = vmul.f32 %v1331, 0.70710677
        %v1364 = vmul.f32 %v1332, 0.70710677
        %v1365 = vmul.f32 %v1333, 0.70710677
        %v1366 = vmul.f32 %v1334, 0.70710677
        %v1367 = vmul.f32 %v1335, 0.70710677
        %v1368 = vmul.f32 %v1352, %v1352
        %v1369 = vmin.f32 16.0, %v1368
        %v1370 = vmul.f32 %v1369, 2.1237322e-06
        %v1371 = vadd.f32 %v1370, 0.00028619796
        %v1372 = vmul.f32 %v1369, %v1371
        %v1373 = vadd.f32 %v1372, 0.0036580483
        %v1374 = vmul.f32 %v1369, %v1373
        %v1375 = vadd.f32 %v1374, 0.05243302
        %v1376 = vmul.f32 %v1369, %v1375
        %v1377 = vadd.f32 %v1376, 0.18741608
        %v1378 = vmul.f32 %v1369, %v1377
        %v1379 = vadd.f32 %v1378, 1.1283791
        %v1380 = vmul.f32 %v1352, %v1379
        %v1381 = vmul.f32 %v1369, 3.8918573e-05
        %v1382 = vadd.f32 %v1381, 0.001143296
        %v1383 = vmul.f32 %v1369, %v1382
        %v1384 = vadd.f32 %v1383, 0.014752088
        %v1385 = vmul.f32 %v1369, %v1384
        %v1386 = vadd.f32 %v1385, 0.112945676
        %v1387 = vmul.f32 %v1369, %v1386
        %v1388 = vadd.f32 %v1387, 0.4994258
        %v1389 = vmul.f32 %v1369, %v1388
        %v1390 = vadd.f32 %v1389, 1.0
        %v1391 = vrcp.pop %v1390
        %v1392 = vmul.f32 %v1390, %v1391
        %v1393 = vsub.f32 1.0, %v1392
        %v1394 = vmul.f32 %v1391, %v1393
        %v1395 = vadd.f32 %v1391, %v1394
        %vm1396 = vweird.f32 %v1390
        %vm1397 = vweird.f32 %v1391
        %vm1398 = vmor %vm1396, %vm1397
        %v1399 = vsel %vm1398, %v1391, %v1395
        %v1400 = vand.u32 2147483647, %v1390
        %vm1401 = vcmp.eq.f32.partialorder %v1400, 8.507059e+37
        %v1402 = vand.u32 %v1390, 2147483648
        %v1403 = vor.u32 1.1754944e-38, %v1402
        %v1404 = vsel %vm1401, %v1403, %v1399
        %v1405 = vmul.f32 %v1380, %v1404
        %v1406 = vmin.f32 %v1405, 1.0
        %v1407 = vmax.f32 %v1406, -1.0
        %v1408 = vmul.f32 %v1353, %v1353
        %v1409 = vmin.f32 16.0, %v1408
        %v1410 = vmul.f32 %v1409, 2.1237322e-06
        %v1411 = vadd.f32 %v1410, 0.00028619796
        %v1412 = vmul.f32 %v1409, %v1411
        %v1413 = vadd.f32 %v1412, 0.0036580483
        %v1414 = vmul.f32 %v1409, %v1413
        %v1415 = vadd.f32 %v1414, 0.05243302
        %v1416 = vmul.f32 %v1409, %v1415
        %v1417 = vadd.f32 %v1416, 0.18741608
        %v1418 = vmul.f32 %v1409, %v1417
        %v1419 = vadd.f32 %v1418, 1.1283791
        %v1420 = vmul.f32 %v1353, %v1419
        %v1421 = vmul.f32 %v1409, 3.8918573e-05
        %v1422 = vadd.f32 %v1421, 0.001143296
        %v1423 = vmul.f32 %v1409, %v1422
        %v1424 = vadd.f32 %v1423, 0.014752088
        %v1425 = vmul.f32 %v1409, %v1424
        %v1426 = vadd.f32 %v1425, 0.112945676
        %v1427 = vmul.f32 %v1409, %v1426
        %v1428 = vadd.f32 %v1427, 0.4994258
        %v1429 = vmul.f32 %v1409, %v1428
        %v1430 = vadd.f32 %v1429, 1.0
        %v1431 = vrcp.pop %v1430
        %v1432 = vmul.f32 %v1430, %v1431
        %v1433 = vsub.f32 1.0, %v1432
        %v1434 = vmul.f32 %v1431, %v1433
        %v1435 = vadd.f32 %v1431, %v1434
        %vm1436 = vweird.f32 %v1430
        %vm1437 = vweird.f32 %v1431
        %vm1438 = vmor %vm1436, %vm1437
        %v1439 = vsel %vm1438, %v1431, %v1435
        %v1440 = vand.u32 2147483647, %v1430
        %vm1441 = vcmp.eq.f32.partialorder %v1440, 8.507059e+37
        %v1442 = vand.u32 %v1430, 2147483648
        %v1443 = vor.u32 1.1754944e-38, %v1442
        %v1444 = vsel %vm1441, %v1443, %v1439
        %v1445 = vmul.f32 %v1420, %v1444
        %v1446 = vmin.f32 %v1445, 1.0
        %v1447 = vmax.f32 %v1446, -1.0
        %v1448 = vmul.f32 %v1354, %v1354
        %v1449 = vmin.f32 16.0, %v1448
        %v1450 = vmul.f32 %v1449, 2.1237322e-06
        %v1451 = vadd.f32 %v1450, 0.00028619796
        %v1452 = vmul.f32 %v1449, %v1451
        %v1453 = vadd.f32 %v1452, 0.0036580483
        %v1454 = vmul.f32 %v1449, %v1453
        %v1455 = vadd.f32 %v1454, 0.05243302
        %v1456 = vmul.f32 %v1449, %v1455
        %v1457 = vadd.f32 %v1456, 0.18741608
        %v1458 = vmul.f32 %v1449, %v1457
        %v1459 = vadd.f32 %v1458, 1.1283791
        %v1460 = vmul.f32 %v1354, %v1459
        %v1461 = vmul.f32 %v1449, 3.8918573e-05
        %v1462 = vadd.f32 %v1461, 0.001143296
        %v1463 = vmul.f32 %v1449, %v1462
        %v1464 = vadd.f32 %v1463, 0.014752088
        %v1465 = vmul.f32 %v1449, %v1464
        %v1466 = vadd.f32 %v1465, 0.112945676
        %v1467 = vmul.f32 %v1449, %v1466
        %v1468 = vadd.f32 %v1467, 0.4994258
        %v1469 = vmul.f32 %v1449, %v1468
        %v1470 = vadd.f32 %v1469, 1.0
        %v1471 = vrcp.pop %v1470
        %v1472 = vmul.f32 %v1470, %v1471
        %v1473 = vsub.f32 1.0, %v1472
        %v1474 = vmul.f32 %v1471, %v1473
        %v1475 = vadd.f32 %v1471, %v1474
        %vm1476 = vweird.f32 %v1470
        %vm1477 = vweird.f32 %v1471
        %vm1478 = vmor %vm1476, %vm1477
        %v1479 = vsel %vm1478, %v1471, %v1475
        %v1480 = vand.u32 2147483647, %v1470
        %vm1481 = vcmp.eq.f32.partialorder %v1480, 8.507059e+37
        %v1482 = vand.u32 %v1470, 2147483648
        %v1483 = vor.u32 1.1754944e-38, %v1482
        %v1484 = vsel %vm1481, %v1483, %v1479
        %v1485 = vmul.f32 %v1460, %v1484
        %v1486 = vmin.f32 %v1485, 1.0
        %v1487 = vmax.f32 %v1486, -1.0
        %v1488 = vmul.f32 %v1355, %v1355
        %v1489 = vmin.f32 16.0, %v1488
        %v1490 = vmul.f32 %v1489, 2.1237322e-06
        %v1491 = vadd.f32 %v1490, 0.00028619796
        %v1492 = vmul.f32 %v1489, %v1491
        %v1493 = vadd.f32 %v1492, 0.0036580483
        %v1494 = vmul.f32 %v1489, %v1493
        %v1495 = vadd.f32 %v1494, 0.05243302
        %v1496 = vmul.f32 %v1489, %v1495
        %v1497 = vadd.f32 %v1496, 0.18741608
        %v1498 = vmul.f32 %v1489, %v1497
        %v1499 = vadd.f32 %v1498, 1.1283791
        %v1500 = vmul.f32 %v1355, %v1499
        %v1501 = vmul.f32 %v1489, 3.8918573e-05
        %v1502 = vadd.f32 %v1501, 0.001143296
        %v1503 = vmul.f32 %v1489, %v1502
        %v1504 = vadd.f32 %v1503, 0.014752088
        %v1505 = vmul.f32 %v1489, %v1504
        %v1506 = vadd.f32 %v1505, 0.112945676
        %v1507 = vmul.f32 %v1489, %v1506
        %v1508 = vadd.f32 %v1507, 0.4994258
        %v1509 = vmul.f32 %v1489, %v1508
        %v1510 = vadd.f32 %v1509, 1.0
        %v1511 = vrcp.pop %v1510
        %v1512 = vmul.f32 %v1510, %v1511
        %v1513 = vsub.f32 1.0, %v1512
        %v1514 = vmul.f32 %v1511, %v1513
        %v1515 = vadd.f32 %v1511, %v1514
        %vm1516 = vweird.f32 %v1510
        %vm1517 = vweird.f32 %v1511
        %vm1518 = vmor %vm1516, %vm1517
        %v1519 = vsel %vm1518, %v1511, %v1515
        %v1520 = vand.u32 2147483647, %v1510
        %vm1521 = vcmp.eq.f32.partialorder %v1520, 8.507059e+37
        %v1522 = vand.u32 %v1510, 2147483648
        %v1523 = vor.u32 1.1754944e-38, %v1522
        %v1524 = vsel %vm1521, %v1523, %v1519
        %v1525 = vmul.f32 %v1500, %v1524
        %v1526 = vmin.f32 %v1525, 1.0
        %v1527 = vmax.f32 %v1526, -1.0
        %v1528 = vmul.f32 %v1356, %v1356
        %v1529 = vmin.f32 16.0, %v1528
        %v1530 = vmul.f32 %v1529, 2.1237322e-06
        %v1531 = vadd.f32 %v1530, 0.00028619796
        %v1532 = vmul.f32 %v1529, %v1531
        %v1533 = vadd.f32 %v1532, 0.0036580483
        %v1534 = vmul.f32 %v1529, %v1533
        %v1535 = vadd.f32 %v1534, 0.05243302
        %v1536 = vmul.f32 %v1529, %v1535
        %v1537 = vadd.f32 %v1536, 0.18741608
        %v1538 = vmul.f32 %v1529, %v1537
        %v1539 = vadd.f32 %v1538, 1.1283791
        %v1540 = vmul.f32 %v1356, %v1539
        %v1541 = vmul.f32 %v1529, 3.8918573e-05
        %v1542 = vadd.f32 %v1541, 0.001143296
        %v1543 = vmul.f32 %v1529, %v1542
        %v1544 = vadd.f32 %v1543, 0.014752088
        %v1545 = vmul.f32 %v1529, %v1544
        %v1546 = vadd.f32 %v1545, 0.112945676
        %v1547 = vmul.f32 %v1529, %v1546
        %v1548 = vadd.f32 %v1547, 0.4994258
        %v1549 = vmul.f32 %v1529, %v1548
        %v1550 = vadd.f32 %v1549, 1.0
        %v1551 = vrcp.pop %v1550
        %v1552 = vmul.f32 %v1550, %v1551
        %v1553 = vsub.f32 1.0, %v1552
        %v1554 = vmul.f32 %v1551, %v1553
        %v1555 = vadd.f32 %v1551, %v1554
        %vm1556 = vweird.f32 %v1550
        %vm1557 = vweird.f32 %v1551
        %vm1558 = vmor %vm1556, %vm1557
        %v1559 = vsel %vm1558, %v1551, %v1555
        %v1560 = vand.u32 2147483647, %v1550
        %vm1561 = vcmp.eq.f32.partialorder %v1560, 8.507059e+37
        %v1562 = vand.u32 %v1550, 2147483648
        %v1563 = vor.u32 1.1754944e-38, %v1562
        %v1564 = vsel %vm1561, %v1563, %v1559
        %v1565 = vmul.f32 %v1540, %v1564
        %v1566 = vmin.f32 %v1565, 1.0
        %v1567 = vmax.f32 %v1566, -1.0
        %v1568 = vmul.f32 %v1357, %v1357
        %v1569 = vmin.f32 16.0, %v1568
        %v1570 = vmul.f32 %v1569, 2.1237322e-06
        %v1571 = vadd.f32 %v1570, 0.00028619796
        %v1572 = vmul.f32 %v1569, %v1571
        %v1573 = vadd.f32 %v1572, 0.0036580483
        %v1574 = vmul.f32 %v1569, %v1573
        %v1575 = vadd.f32 %v1574, 0.05243302
        %v1576 = vmul.f32 %v1569, %v1575
        %v1577 = vadd.f32 %v1576, 0.18741608
        %v1578 = vmul.f32 %v1569, %v1577
        %v1579 = vadd.f32 %v1578, 1.1283791
        %v1580 = vmul.f32 %v1357, %v1579
        %v1581 = vmul.f32 %v1569, 3.8918573e-05
        %v1582 = vadd.f32 %v1581, 0.001143296
        %v1583 = vmul.f32 %v1569, %v1582
        %v1584 = vadd.f32 %v1583, 0.014752088
        %v1585 = vmul.f32 %v1569, %v1584
        %v1586 = vadd.f32 %v1585, 0.112945676
        %v1587 = vmul.f32 %v1569, %v1586
        %v1588 = vadd.f32 %v1587, 0.4994258
        %v1589 = vmul.f32 %v1569, %v1588
        %v1590 = vadd.f32 %v1589, 1.0
        %v1591 = vrcp.pop %v1590
        %v1592 = vmul.f32 %v1590, %v1591
        %v1593 = vsub.f32 1.0, %v1592
        %v1594 = vmul.f32 %v1591, %v1593
        %v1595 = vadd.f32 %v1591, %v1594
        %vm1596 = vweird.f32 %v1590
        %vm1597 = vweird.f32 %v1591
        %vm1598 = vmor %vm1596, %vm1597
        %v1599 = vsel %vm1598, %v1591, %v1595
        %v1600 = vand.u32 2147483647, %v1590
        %vm1601 = vcmp.eq.f32.partialorder %v1600, 8.507059e+37
        %v1602 = vand.u32 %v1590, 2147483648
        %v1603 = vor.u32 1.1754944e-38, %v1602
        %v1604 = vsel %vm1601, %v1603, %v1599
        %v1605 = vmul.f32 %v1580, %v1604
        %v1606 = vmin.f32 %v1605, 1.0
        %v1607 = vmax.f32 %v1606, -1.0
        %v1608 = vmul.f32 %v1358, %v1358
        %v1609 = vmin.f32 16.0, %v1608
        %v1610 = vmul.f32 %v1609, 2.1237322e-06
        %v1611 = vadd.f32 %v1610, 0.00028619796
        %v1612 = vmul.f32 %v1609, %v1611
        %v1613 = vadd.f32 %v1612, 0.0036580483
        %v1614 = vmul.f32 %v1609, %v1613
        %v1615 = vadd.f32 %v1614, 0.05243302
        %v1616 = vmul.f32 %v1609, %v1615
        %v1617 = vadd.f32 %v1616, 0.18741608
        %v1618 = vmul.f32 %v1609, %v1617
        %v1619 = vadd.f32 %v1618, 1.1283791
        %v1620 = vmul.f32 %v1358, %v1619
        %v1621 = vmul.f32 %v1609, 3.8918573e-05
        %v1622 = vadd.f32 %v1621, 0.001143296
        %v1623 = vmul.f32 %v1609, %v1622
        %v1624 = vadd.f32 %v1623, 0.014752088
        %v1625 = vmul.f32 %v1609, %v1624
        %v1626 = vadd.f32 %v1625, 0.112945676
        %v1627 = vmul.f32 %v1609, %v1626
        %v1628 = vadd.f32 %v1627, 0.4994258
        %v1629 = vmul.f32 %v1609, %v1628
        %v1630 = vadd.f32 %v1629, 1.0
        %v1631 = vrcp.pop %v1630
        %v1632 = vmul.f32 %v1630, %v1631
        %v1633 = vsub.f32 1.0, %v1632
        %v1634 = vmul.f32 %v1631, %v1633
        %v1635 = vadd.f32 %v1631, %v1634
        %vm1636 = vweird.f32 %v1630
        %vm1637 = vweird.f32 %v1631
        %vm1638 = vmor %vm1636, %vm1637
        %v1639 = vsel %vm1638, %v1631, %v1635
        %v1640 = vand.u32 2147483647, %v1630
        %vm1641 = vcmp.eq.f32.partialorder %v1640, 8.507059e+37
        %v1642 = vand.u32 %v1630, 2147483648
        %v1643 = vor.u32 1.1754944e-38, %v1642
        %v1644 = vsel %vm1641, %v1643, %v1639
        %v1645 = vmul.f32 %v1620, %v1644
        %v1646 = vmin.f32 %v1645, 1.0
        %v1647 = vmax.f32 %v1646, -1.0
        %v1648 = vmul.f32 %v1359, %v1359
        %v1649 = vmin.f32 16.0, %v1648
        %v1650 = vmul.f32 %v1649, 2.1237322e-06
        %v1651 = vadd.f32 %v1650, 0.00028619796
        %v1652 = vmul.f32 %v1649, %v1651
        %v1653 = vadd.f32 %v1652, 0.0036580483
        %v1654 = vmul.f32 %v1649, %v1653
        %v1655 = vadd.f32 %v1654, 0.05243302
        %v1656 = vmul.f32 %v1649, %v1655
        %v1657 = vadd.f32 %v1656, 0.18741608
        %v1658 = vmul.f32 %v1649, %v1657
        %v1659 = vadd.f32 %v1658, 1.1283791
        %v1660 = vmul.f32 %v1359, %v1659
        %v1661 = vmul.f32 %v1649, 3.8918573e-05
        %v1662 = vadd.f32 %v1661, 0.001143296
        %v1663 = vmul.f32 %v1649, %v1662
        %v1664 = vadd.f32 %v1663, 0.014752088
        %v1665 = vmul.f32 %v1649, %v1664
        %v1666 = vadd.f32 %v1665, 0.112945676
        %v1667 = vmul.f32 %v1649, %v1666
        %v1668 = vadd.f32 %v1667, 0.4994258
        %v1669 = vmul.f32 %v1649, %v1668
        %v1670 = vadd.f32 %v1669, 1.0
        %v1671 = vrcp.pop %v1670
        %v1672 = vmul.f32 %v1670, %v1671
        %v1673 = vsub.f32 1.0, %v1672
        %v1674 = vmul.f32 %v1671, %v1673
        %v1675 = vadd.f32 %v1671, %v1674
        %vm1676 = vweird.f32 %v1670
        %vm1677 = vweird.f32 %v1671
        %vm1678 = vmor %vm1676, %vm1677
        %v1679 = vsel %vm1678, %v1671, %v1675
        %v1680 = vand.u32 2147483647, %v1670
        %vm1681 = vcmp.eq.f32.partialorder %v1680, 8.507059e+37
        %v1682 = vand.u32 %v1670, 2147483648
        %v1683 = vor.u32 1.1754944e-38, %v1682
        %v1684 = vsel %vm1681, %v1683, %v1679
        %v1685 = vmul.f32 %v1660, %v1684
        %v1686 = vmin.f32 %v1685, 1.0
        %v1687 = vmax.f32 %v1686, -1.0
        %v1688 = vmul.f32 %v1360, %v1360
        %v1689 = vmin.f32 16.0, %v1688
        %v1690 = vmul.f32 %v1689, 2.1237322e-06
        %v1691 = vadd.f32 %v1690, 0.00028619796
        %v1692 = vmul.f32 %v1689, %v1691
        %v1693 = vadd.f32 %v1692, 0.0036580483
        %v1694 = vmul.f32 %v1689, %v1693
        %v1695 = vadd.f32 %v1694, 0.05243302
        %v1696 = vmul.f32 %v1689, %v1695
        %v1697 = vadd.f32 %v1696, 0.18741608
        %v1698 = vmul.f32 %v1689, %v1697
        %v1699 = vadd.f32 %v1698, 1.1283791
        %v1700 = vmul.f32 %v1360, %v1699
        %v1701 = vmul.f32 %v1689, 3.8918573e-05
        %v1702 = vadd.f32 %v1701, 0.001143296
        %v1703 = vmul.f32 %v1689, %v1702
        %v1704 = vadd.f32 %v1703, 0.014752088
        %v1705 = vmul.f32 %v1689, %v1704
        %v1706 = vadd.f32 %v1705, 0.112945676
        %v1707 = vmul.f32 %v1689, %v1706
        %v1708 = vadd.f32 %v1707, 0.4994258
        %v1709 = vmul.f32 %v1689, %v1708
        %v1710 = vadd.f32 %v1709, 1.0
        %v1711 = vrcp.pop %v1710
        %v1712 = vmul.f32 %v1710, %v1711
        %v1713 = vsub.f32 1.0, %v1712
        %v1714 = vmul.f32 %v1711, %v1713
        %v1715 = vadd.f32 %v1711, %v1714
        %vm1716 = vweird.f32 %v1710
        %vm1717 = vweird.f32 %v1711
        %vm1718 = vmor %vm1716, %vm1717
        %v1719 = vsel %vm1718, %v1711, %v1715
        %v1720 = vand.u32 2147483647, %v1710
        %vm1721 = vcmp.eq.f32.partialorder %v1720, 8.507059e+37
        %v1722 = vand.u32 %v1710, 2147483648
        %v1723 = vor.u32 1.1754944e-38, %v1722
        %v1724 = vsel %vm1721, %v1723, %v1719
        %v1725 = vmul.f32 %v1700, %v1724
        %v1726 = vmin.f32 %v1725, 1.0
        %v1727 = vmax.f32 %v1726, -1.0
        %v1728 = vmul.f32 %v1361, %v1361
        %v1729 = vmin.f32 16.0, %v1728
        %v1730 = vmul.f32 %v1729, 2.1237322e-06
        %v1731 = vadd.f32 %v1730, 0.00028619796
        %v1732 = vmul.f32 %v1729, %v1731
        %v1733 = vadd.f32 %v1732, 0.0036580483
        %v1734 = vmul.f32 %v1729, %v1733
        %v1735 = vadd.f32 %v1734, 0.05243302
        %v1736 = vmul.f32 %v1729, %v1735
        %v1737 = vadd.f32 %v1736, 0.18741608
        %v1738 = vmul.f32 %v1729, %v1737
        %v1739 = vadd.f32 %v1738, 1.1283791
        %v1740 = vmul.f32 %v1361, %v1739
        %v1741 = vmul.f32 %v1729, 3.8918573e-05
        %v1742 = vadd.f32 %v1741, 0.001143296
        %v1743 = vmul.f32 %v1729, %v1742
        %v1744 = vadd.f32 %v1743, 0.014752088
        %v1745 = vmul.f32 %v1729, %v1744
        %v1746 = vadd.f32 %v1745, 0.112945676
        %v1747 = vmul.f32 %v1729, %v1746
        %v1748 = vadd.f32 %v1747, 0.4994258
        %v1749 = vmul.f32 %v1729, %v1748
        %v1750 = vadd.f32 %v1749, 1.0
        %v1751 = vrcp.pop %v1750
        %v1752 = vmul.f32 %v1750, %v1751
        %v1753 = vsub.f32 1.0, %v1752
        %v1754 = vmul.f32 %v1751, %v1753
        %v1755 = vadd.f32 %v1751, %v1754
        %vm1756 = vweird.f32 %v1750
        %vm1757 = vweird.f32 %v1751
        %vm1758 = vmor %vm1756, %vm1757
        %v1759 = vsel %vm1758, %v1751, %v1755
        %v1760 = vand.u32 2147483647, %v1750
        %vm1761 = vcmp.eq.f32.partialorder %v1760, 8.507059e+37
        %v1762 = vand.u32 %v1750, 2147483648
        %v1763 = vor.u32 1.1754944e-38, %v1762
        %v1764 = vsel %vm1761, %v1763, %v1759
        %v1765 = vmul.f32 %v1740, %v1764
        %v1766 = vmin.f32 %v1765, 1.0
        %v1767 = vmax.f32 %v1766, -1.0
        %v1768 = vmul.f32 %v1362, %v1362
        %v1769 = vmin.f32 16.0, %v1768
        %v1770 = vmul.f32 %v1769, 2.1237322e-06
        %v1771 = vadd.f32 %v1770, 0.00028619796
        %v1772 = vmul.f32 %v1769, %v1771
        %v1773 = vadd.f32 %v1772, 0.0036580483
        %v1774 = vmul.f32 %v1769, %v1773
        %v1775 = vadd.f32 %v1774, 0.05243302
        %v1776 = vmul.f32 %v1769, %v1775
        %v1777 = vadd.f32 %v1776, 0.18741608
        %v1778 = vmul.f32 %v1769, %v1777
        %v1779 = vadd.f32 %v1778, 1.1283791
        %v1780 = vmul.f32 %v1362, %v1779
        %v1781 = vmul.f32 %v1769, 3.8918573e-05
        %v1782 = vadd.f32 %v1781, 0.001143296
        %v1783 = vmul.f32 %v1769, %v1782
        %v1784 = vadd.f32 %v1783, 0.014752088
        %v1785 = vmul.f32 %v1769, %v1784
        %v1786 = vadd.f32 %v1785, 0.112945676
        %v1787 = vmul.f32 %v1769, %v1786
        %v1788 = vadd.f32 %v1787, 0.4994258
        %v1789 = vmul.f32 %v1769, %v1788
        %v1790 = vadd.f32 %v1789, 1.0
        %v1791 = vrcp.pop %v1790
        %v1792 = vmul.f32 %v1790, %v1791
        %v1793 = vsub.f32 1.0, %v1792
        %v1794 = vmul.f32 %v1791, %v1793
        %v1795 = vadd.f32 %v1791, %v1794
        %vm1796 = vweird.f32 %v1790
        %vm1797 = vweird.f32 %v1791
        %vm1798 = vmor %vm1796, %vm1797
        %v1799 = vsel %vm1798, %v1791, %v1795
        %v1800 = vand.u32 2147483647, %v1790
        %vm1801 = vcmp.eq.f32.partialorder %v1800, 8.507059e+37
        %v1802 = vand.u32 %v1790, 2147483648
        %v1803 = vor.u32 1.1754944e-38, %v1802
        %v1804 = vsel %vm1801, %v1803, %v1799
        %v1805 = vmul.f32 %v1780, %v1804
        %v1806 = vmin.f32 %v1805, 1.0
        %v1807 = vmax.f32 %v1806, -1.0
        %v1808 = vmul.f32 %v1363, %v1363
        %v1809 = vmin.f32 16.0, %v1808
        %v1810 = vmul.f32 %v1809, 2.1237322e-06
        %v1811 = vadd.f32 %v1810, 0.00028619796
        %v1812 = vmul.f32 %v1809, %v1811
        %v1813 = vadd.f32 %v1812, 0.0036580483
        %v1814 = vmul.f32 %v1809, %v1813
        %v1815 = vadd.f32 %v1814, 0.05243302
        %v1816 = vmul.f32 %v1809, %v1815
        %v1817 = vadd.f32 %v1816, 0.18741608
        %v1818 = vmul.f32 %v1809, %v1817
        %v1819 = vadd.f32 %v1818, 1.1283791
        %v1820 = vmul.f32 %v1363, %v1819
        %v1821 = vmul.f32 %v1809, 3.8918573e-05
        %v1822 = vadd.f32 %v1821, 0.001143296
        %v1823 = vmul.f32 %v1809, %v1822
        %v1824 = vadd.f32 %v1823, 0.014752088
        %v1825 = vmul.f32 %v1809, %v1824
        %v1826 = vadd.f32 %v1825, 0.112945676
        %v1827 = vmul.f32 %v1809, %v1826
        %v1828 = vadd.f32 %v1827, 0.4994258
        %v1829 = vmul.f32 %v1809, %v1828
        %v1830 = vadd.f32 %v1829, 1.0
        %v1831 = vrcp.pop %v1830
        %v1832 = vmul.f32 %v1830, %v1831
        %v1833 = vsub.f32 1.0, %v1832
        %v1834 = vmul.f32 %v1831, %v1833
        %v1835 = vadd.f32 %v1831, %v1834
        %vm1836 = vweird.f32 %v1830
        %vm1837 = vweird.f32 %v1831
        %vm1838 = vmor %vm1836, %vm1837
        %v1839 = vsel %vm1838, %v1831, %v1835
        %v1840 = vand.u32 2147483647, %v1830
        %vm1841 = vcmp.eq.f32.partialorder %v1840, 8.507059e+37
        %v1842 = vand.u32 %v1830, 2147483648
        %v1843 = vor.u32 1.1754944e-38, %v1842
        %v1844 = vsel %vm1841, %v1843, %v1839
        %v1845 = vmul.f32 %v1820, %v1844
        %v1846 = vmin.f32 %v1845, 1.0
        %v1847 = vmax.f32 %v1846, -1.0
        %v1848 = vmul.f32 %v1364, %v1364
        %v1849 = vmin.f32 16.0, %v1848
        %v1850 = vmul.f32 %v1849, 2.1237322e-06
        %v1851 = vadd.f32 %v1850, 0.00028619796
        %v1852 = vmul.f32 %v1849, %v1851
        %v1853 = vadd.f32 %v1852, 0.0036580483
        %v1854 = vmul.f32 %v1849, %v1853
        %v1855 = vadd.f32 %v1854, 0.05243302
        %v1856 = vmul.f32 %v1849, %v1855
        %v1857 = vadd.f32 %v1856, 0.18741608
        %v1858 = vmul.f32 %v1849, %v1857
        %v1859 = vadd.f32 %v1858, 1.1283791
        %v1860 = vmul.f32 %v1364, %v1859
        %v1861 = vmul.f32 %v1849, 3.8918573e-05
        %v1862 = vadd.f32 %v1861, 0.001143296
        %v1863 = vmul.f32 %v1849, %v1862
        %v1864 = vadd.f32 %v1863, 0.014752088
        %v1865 = vmul.f32 %v1849, %v1864
        %v1866 = vadd.f32 %v1865, 0.112945676
        %v1867 = vmul.f32 %v1849, %v1866
        %v1868 = vadd.f32 %v1867, 0.4994258
        %v1869 = vmul.f32 %v1849, %v1868
        %v1870 = vadd.f32 %v1869, 1.0
        %v1871 = vrcp.pop %v1870
        %v1872 = vmul.f32 %v1870, %v1871
        %v1873 = vsub.f32 1.0, %v1872
        %v1874 = vmul.f32 %v1871, %v1873
        %v1875 = vadd.f32 %v1871, %v1874
        %vm1876 = vweird.f32 %v1870
        %vm1877 = vweird.f32 %v1871
        %vm1878 = vmor %vm1876, %vm1877
        %v1879 = vsel %vm1878, %v1871, %v1875
        %v1880 = vand.u32 2147483647, %v1870
        %vm1881 = vcmp.eq.f32.partialorder %v1880, 8.507059e+37
        %v1882 = vand.u32 %v1870, 2147483648
        %v1883 = vor.u32 1.1754944e-38, %v1882
        %v1884 = vsel %vm1881, %v1883, %v1879
        %v1885 = vmul.f32 %v1860, %v1884
        %v1886 = vmin.f32 %v1885, 1.0
        %v1887 = vmax.f32 %v1886, -1.0
        %v1888 = vmul.f32 %v1365, %v1365
        %v1889 = vmin.f32 16.0, %v1888
        %v1890 = vmul.f32 %v1889, 2.1237322e-06
        %v1891 = vadd.f32 %v1890, 0.00028619796
        %v1892 = vmul.f32 %v1889, %v1891
        %v1893 = vadd.f32 %v1892, 0.0036580483
        %v1894 = vmul.f32 %v1889, %v1893
        %v1895 = vadd.f32 %v1894, 0.05243302
        %v1896 = vmul.f32 %v1889, %v1895
        %v1897 = vadd.f32 %v1896, 0.18741608
        %v1898 = vmul.f32 %v1889, %v1897
        %v1899 = vadd.f32 %v1898, 1.1283791
        %v1900 = vmul.f32 %v1365, %v1899
        %v1901 = vmul.f32 %v1889, 3.8918573e-05
        %v1902 = vadd.f32 %v1901, 0.001143296
        %v1903 = vmul.f32 %v1889, %v1902
        %v1904 = vadd.f32 %v1903, 0.014752088
        %v1905 = vmul.f32 %v1889, %v1904
        %v1906 = vadd.f32 %v1905, 0.112945676
        %v1907 = vmul.f32 %v1889, %v1906
        %v1908 = vadd.f32 %v1907, 0.4994258
        %v1909 = vmul.f32 %v1889, %v1908
        %v1910 = vadd.f32 %v1909, 1.0
        %v1911 = vrcp.pop %v1910
        %v1912 = vmul.f32 %v1910, %v1911
        %v1913 = vsub.f32 1.0, %v1912
        %v1914 = vmul.f32 %v1911, %v1913
        %v1915 = vadd.f32 %v1911, %v1914
        %vm1916 = vweird.f32 %v1910
        %vm1917 = vweird.f32 %v1911
        %vm1918 = vmor %vm1916, %vm1917
        %v1919 = vsel %vm1918, %v1911, %v1915
        %v1920 = vand.u32 2147483647, %v1910
        %vm1921 = vcmp.eq.f32.partialorder %v1920, 8.507059e+37
        %v1922 = vand.u32 %v1910, 2147483648
        %v1923 = vor.u32 1.1754944e-38, %v1922
        %v1924 = vsel %vm1921, %v1923, %v1919
        %v1925 = vmul.f32 %v1900, %v1924
        %v1926 = vmin.f32 %v1925, 1.0
        %v1927 = vmax.f32 %v1926, -1.0
        %v1928 = vmul.f32 %v1366, %v1366
        %v1929 = vmin.f32 16.0, %v1928
        %v1930 = vmul.f32 %v1929, 2.1237322e-06
        %v1931 = vadd.f32 %v1930, 0.00028619796
        %v1932 = vmul.f32 %v1929, %v1931
        %v1933 = vadd.f32 %v1932, 0.0036580483
        %v1934 = vmul.f32 %v1929, %v1933
        %v1935 = vadd.f32 %v1934, 0.05243302
        %v1936 = vmul.f32 %v1929, %v1935
        %v1937 = vadd.f32 %v1936, 0.18741608
        %v1938 = vmul.f32 %v1929, %v1937
        %v1939 = vadd.f32 %v1938, 1.1283791
        %v1940 = vmul.f32 %v1366, %v1939
        %v1941 = vmul.f32 %v1929, 3.8918573e-05
        %v1942 = vadd.f32 %v1941, 0.001143296
        %v1943 = vmul.f32 %v1929, %v1942
        %v1944 = vadd.f32 %v1943, 0.014752088
        %v1945 = vmul.f32 %v1929, %v1944
        %v1946 = vadd.f32 %v1945, 0.112945676
        %v1947 = vmul.f32 %v1929, %v1946
        %v1948 = vadd.f32 %v1947, 0.4994258
        %v1949 = vmul.f32 %v1929, %v1948
        %v1950 = vadd.f32 %v1949, 1.0
        %v1951 = vrcp.pop %v1950
        %v1952 = vmul.f32 %v1950, %v1951
        %v1953 = vsub.f32 1.0, %v1952
        %v1954 = vmul.f32 %v1951, %v1953
        %v1955 = vadd.f32 %v1951, %v1954
        %vm1956 = vweird.f32 %v1950
        %vm1957 = vweird.f32 %v1951
        %vm1958 = vmor %vm1956, %vm1957
        %v1959 = vsel %vm1958, %v1951, %v1955
        %v1960 = vand.u32 2147483647, %v1950
        %vm1961 = vcmp.eq.f32.partialorder %v1960, 8.507059e+37
        %v1962 = vand.u32 %v1950, 2147483648
        %v1963 = vor.u32 1.1754944e-38, %v1962
        %v1964 = vsel %vm1961, %v1963, %v1959
        %v1965 = vmul.f32 %v1940, %v1964
        %v1966 = vmin.f32 %v1965, 1.0
        %v1967 = vmax.f32 %v1966, -1.0
        %v1968 = vmul.f32 %v1367, %v1367
        %v1969 = vmin.f32 16.0, %v1968
        %v1970 = vmul.f32 %v1969, 2.1237322e-06
        %v1971 = vadd.f32 %v1970, 0.00028619796
        %v1972 = vmul.f32 %v1969, %v1971
        %v1973 = vadd.f32 %v1972, 0.0036580483
        %v1974 = vmul.f32 %v1969, %v1973
        %v1975 = vadd.f32 %v1974, 0.05243302
        %v1976 = vmul.f32 %v1969, %v1975
        %v1977 = vadd.f32 %v1976, 0.18741608
        %v1978 = vmul.f32 %v1969, %v1977
        %v1979 = vadd.f32 %v1978, 1.1283791
        %v1980 = vmul.f32 %v1367, %v1979
        %v1981 = vmul.f32 %v1969, 3.8918573e-05
        %v1982 = vadd.f32 %v1981, 0.001143296
        %v1983 = vmul.f32 %v1969, %v1982
        %v1984 = vadd.f32 %v1983, 0.014752088
        %v1985 = vmul.f32 %v1969, %v1984
        %v1986 = vadd.f32 %v1985, 0.112945676
        %v1987 = vmul.f32 %v1969, %v1986
        %v1988 = vadd.f32 %v1987, 0.4994258
        %v1989 = vmul.f32 %v1969, %v1988
        %v1990 = vadd.f32 %v1989, 1.0
        %v1991 = vrcp.pop %v1990
        %v1992 = vmul.f32 %v1990, %v1991
        %v1993 = vsub.f32 1.0, %v1992
        %v1994 = vmul.f32 %v1991, %v1993
        %v1995 = vadd.f32 %v1991, %v1994
        %vm1996 = vweird.f32 %v1990
        %vm1997 = vweird.f32 %v1991
        %vm1998 = vmor %vm1996, %vm1997
        %v1999 = vsel %vm1998, %v1991, %v1995
        %v2000 = vand.u32 2147483647, %v1990
        %vm2001 = vcmp.eq.f32.partialorder %v2000, 8.507059e+37
        %v2002 = vand.u32 %v1990, 2147483648
        %v2003 = vor.u32 1.1754944e-38, %v2002
        %v2004 = vsel %vm2001, %v2003, %v1999
        %v2005 = vmul.f32 %v1980, %v2004
        %v2006 = vmin.f32 %v2005, 1.0
        %v2007 = vmax.f32 %v2006, -1.0
        %v2008 = vadd.f32 %v1407, 1.0
        %v2009 = vadd.f32 %v1447, 1.0
        %v2010 = vadd.f32 %v1487, 1.0
        %v2011 = vadd.f32 %v1527, 1.0
        %v2012 = vadd.f32 %v1567, 1.0
        %v2013 = vadd.f32 %v1607, 1.0
        %v2014 = vadd.f32 %v1647, 1.0
        %v2015 = vadd.f32 %v1687, 1.0
        %v2016 = vadd.f32 %v1727, 1.0
        %v2017 = vadd.f32 %v1767, 1.0
        %v2018 = vadd.f32 %v1807, 1.0
        %v2019 = vadd.f32 %v1847, 1.0
        %v2020 = vadd.f32 %v1887, 1.0
        %v2021 = vadd.f32 %v1927, 1.0
        %v2022 = vadd.f32 %v1967, 1.0
        %v2023 = vadd.f32 %v2007, 1.0
        %v2024 = vmul.f32 %v1336, %v2008
        %v2025 = vmul.f32 %v1337, %v2009
        %v2026 = vmul.f32 %v1338, %v2010
        %v2027 = vmul.f32 %v1339, %v2011
        %v2028 = vmul.f32 %v1340, %v2012
        %v2029 = vmul.f32 %v1341, %v2013
        %v2030 = vmul.f32 %v1342, %v2014
        %v2031 = vmul.f32 %v1343, %v2015
        %v2032 = vmul.f32 %v1344, %v2016
        %v2033 = vmul.f32 %v1345, %v2017
        %v2034 = vmul.f32 %v1346, %v2018
        %v2035 = vmul.f32 %v1347, %v2019
        %v2036 = vmul.f32 %v1348, %v2020
        %v2037 = vmul.f32 %v1349, %v2021
        %v2038 = vmul.f32 %v1350, %v2022
        %v2039 = vmul.f32 %v1351, %v2023
        %v2040 = vpack.c.bf16 %v2026, %v2024
        %v2041 = vpack.c.bf16 %v2027, %v2025
        %v2042 = vpack.c.bf16 %v2030, %v2028
        %v2043 = vpack.c.bf16 %v2031, %v2029
        %v2044 = vpack.c.bf16 %v2034, %v2032
        %v2045 = vpack.c.bf16 %v2035, %v2033
        %v2046 = vpack.c.bf16 %v2038, %v2036
        %v2047 = vpack.c.bf16 %v2039, %v2037
        %v2048 = vld [vmem:[%s7] sm:$0xf]
        %v2049 = vld [vmem:[%s7 + $0x4] sm:$0xf]
        %v2050 = vld [vmem:[%s7 + $0x8] sm:$0xf]
        %v2051 = vld [vmem:[%s7 + $0xc] sm:$0xf]
        %v2052 = vld [vmem:[%s7 + $0x10] sm:$0xf]
        %v2053 = vld [vmem:[%s7 + $0x14] sm:$0xf]
        %v2054 = vld [vmem:[%s7 + $0x18] sm:$0xf]
        %v2055 = vld [vmem:[%s7 + $0x1c] sm:$0xf]
        %v2056 = vld [vmem:[%s7 + $0x20] sm:$0xf]
        %v2057 = vld [vmem:[%s7 + $0x24] sm:$0xf]
        %v2058 = vld [vmem:[%s7 + $0x28] sm:$0xf]
        %v2059 = vld [vmem:[%s7 + $0x2c] sm:$0xf]
        %v2060 = vld [vmem:[%s7 + $0x30] sm:$0xf]
        %v2061 = vld [vmem:[%s7 + $0x34] sm:$0xf]
        %v2062 = vld [vmem:[%s7 + $0x38] sm:$0xf]
        %v2063 = vld [vmem:[%s7 + $0x3c] sm:$0xf]
        %v2064 = vld [vmem:[%s7 + $0x40] sm:$0xf]
        %v2065 = vld [vmem:[%s7 + $0x44] sm:$0xf]
        %v2066 = vld [vmem:[%s7 + $0x48] sm:$0xf]
        %v2067 = vld [vmem:[%s7 + $0x4c] sm:$0xf]
        %v2068 = vld [vmem:[%s7 + $0x50] sm:$0xf]
        %v2069 = vld [vmem:[%s7 + $0x54] sm:$0xf]
        %v2070 = vld [vmem:[%s7 + $0x58] sm:$0xf]
        %v2071 = vld [vmem:[%s7 + $0x5c] sm:$0xf]
        %v2072 = vld [vmem:[%s7 + $0x60] sm:$0xf]
        %v2073 = vld [vmem:[%s7 + $0x64] sm:$0xf]
        %v2074 = vld [vmem:[%s7 + $0x68] sm:$0xf]
        %v2075 = vld [vmem:[%s7 + $0x6c] sm:$0xf]
        %v2076 = vld [vmem:[%s7 + $0x70] sm:$0xf]
        %v2077 = vld [vmem:[%s7 + $0x74] sm:$0xf]
        %v2078 = vld [vmem:[%s7 + $0x78] sm:$0xf]
        %v2079 = vld [vmem:[%s7 + $0x7c] sm:$0xf]
        %v2080 = vld [vmem:[%s8] sm:$0x1]
        %v2082 = vperm.slane %v2080, 0
        %v2116 = vunpack.c.l.b16 %v2048
        %v2117 = vunpack.c.l.b16 %v2049
        %v2118 = vunpack.c.l.b16 %v2050
        %v2119 = vunpack.c.l.b16 %v2051
        %v2120 = vunpack.c.l.b16 %v2052
        %v2121 = vunpack.c.l.b16 %v2053
        %v2122 = vunpack.c.l.b16 %v2054
        %v2123 = vunpack.c.l.b16 %v2055
        %v2124 = vunpack.c.l.b16 %v2056
        %v2125 = vunpack.c.l.b16 %v2057
        %v2126 = vunpack.c.l.b16 %v2058
        %v2127 = vunpack.c.l.b16 %v2059
        %v2128 = vunpack.c.l.b16 %v2060
        %v2129 = vunpack.c.l.b16 %v2061
        %v2130 = vunpack.c.l.b16 %v2062
        %v2131 = vunpack.c.l.b16 %v2063
        %v2132 = vunpack.c.l.b16 %v2064
        %v2133 = vunpack.c.l.b16 %v2065
        %v2134 = vunpack.c.l.b16 %v2066
        %v2135 = vunpack.c.l.b16 %v2067
        %v2136 = vunpack.c.l.b16 %v2068
        %v2137 = vunpack.c.l.b16 %v2069
        %v2138 = vunpack.c.l.b16 %v2070
        %v2139 = vunpack.c.l.b16 %v2071
        %v2140 = vunpack.c.l.b16 %v2072
        %v2141 = vunpack.c.l.b16 %v2073
        %v2142 = vunpack.c.l.b16 %v2074
        %v2143 = vunpack.c.l.b16 %v2075
        %v2144 = vunpack.c.l.b16 %v2076
        %v2145 = vunpack.c.l.b16 %v2077
        %v2146 = vunpack.c.l.b16 %v2078
        %v2147 = vunpack.c.l.b16 %v2079
        %v2148 = vpack.c.b16 %v2117, %v2116
        %v2149 = vpack.c.b16 %v2119, %v2118
        %v2150 = vpack.c.b16 %v2121, %v2120
        %v2151 = vpack.c.b16 %v2123, %v2122
        %v2152 = vpack.c.b16 %v2125, %v2124
        %v2153 = vpack.c.b16 %v2127, %v2126
        %v2154 = vpack.c.b16 %v2129, %v2128
        %v2155 = vpack.c.b16 %v2131, %v2130
        %v2156 = vpack.c.b16 %v2133, %v2132
        %v2157 = vpack.c.b16 %v2135, %v2134
        %v2158 = vpack.c.b16 %v2137, %v2136
        %v2159 = vpack.c.b16 %v2139, %v2138
        %v2160 = vpack.c.b16 %v2141, %v2140
        %v2161 = vpack.c.b16 %v2143, %v2142
        %v2162 = vpack.c.b16 %v2145, %v2144
        %v2163 = vpack.c.b16 %v2147, %v2146
        %2180 = vmatpush.bf16.msra.mxu0 %v2155
        %2181 = vmatpush.bf16.msra.mxu0 %v2154
        %2182 = vmatpush.bf16.msra.mxu0 %v2153
        %2183 = vmatpush.bf16.msra.mxu0 %v2152
        %2184 = vmatpush.bf16.msra.mxu0 %v2151
        %2185 = vmatpush.bf16.msra.mxu0 %v2150
        %2186 = vmatpush.bf16.msra.mxu0 %v2149
        %2187 = vmatpush.bf16.msra.mxu0 %v2148
        %2188 = vmatmul.bf16.gmra.mxu0 %v2040
        %v2189 = vpop.f32.mrf.mxu0
        %v2190 = vadd.f32 %v2082, %v2189
        %v2191 = vpop.f32.mrf.mxu0
        %v2192 = vadd.f32 %v2082, %v2191
        %2193 = vmatmul.bf16.gmra.mxu0 %v2042
        %v2194 = vpop.f32.mrf.mxu0
        %v2195 = vadd.f32 %v2082, %v2194
        %v2196 = vpop.f32.mrf.mxu0
        %v2197 = vadd.f32 %v2082, %v2196
        %2198 = vmatmul.bf16.gmra.mxu0 %v2044
        %v2199 = vpop.f32.mrf.mxu0
        %v2200 = vadd.f32 %v2082, %v2199
        %v2201 = vpop.f32.mrf.mxu0
        %v2202 = vadd.f32 %v2082, %v2201
        %2203 = vmatmul.bf16.gmra.mxu0 %v2046
        %v2204 = vpop.f32.mrf.mxu0
        %v2205 = vadd.f32 %v2082, %v2204
        %v2206 = vpop.f32.mrf.mxu0
        %v2207 = vadd.f32 %v2082, %v2206
        %2208 = vdwg.mxu0
        %2209 = vmatpush.bf16.msra.mxu0 %v2163
        %2210 = vmatpush.bf16.msra.mxu0 %v2162
        %2211 = vmatpush.bf16.msra.mxu0 %v2161
        %2212 = vmatpush.bf16.msra.mxu0 %v2160
        %2213 = vmatpush.bf16.msra.mxu0 %v2159
        %2214 = vmatpush.bf16.msra.mxu0 %v2158
        %2215 = vmatpush.bf16.msra.mxu0 %v2157
        %2216 = vmatpush.bf16.msra.mxu0 %v2156
        %2217 = vmatmul.bf16.gmra.mxu0 %v2041
        %v2218 = vpop.f32.mrf.mxu0
        %v2219 = vadd.f32 %v2190, %v2218
        %v2220 = vpop.f32.mrf.mxu0
        %v2221 = vadd.f32 %v2192, %v2220
        %2222 = vmatmul.bf16.gmra.mxu0 %v2043
        %v2223 = vpop.f32.mrf.mxu0
        %v2224 = vadd.f32 %v2195, %v2223
        %v2225 = vpop.f32.mrf.mxu0
        %v2226 = vadd.f32 %v2197, %v2225
        %2227 = vmatmul.bf16.gmra.mxu0 %v2045
        %v2228 = vpop.f32.mrf.mxu0
        %v2229 = vadd.f32 %v2200, %v2228
        %v2230 = vpop.f32.mrf.mxu0
        %v2231 = vadd.f32 %v2202, %v2230
        %2232 = vmatmul.bf16.gmra.mxu0 %v2047
        %v2233 = vpop.f32.mrf.mxu0
        %v2234 = vadd.f32 %v2205, %v2233
        %v2235 = vpop.f32.mrf.mxu0
        %v2236 = vadd.f32 %v2207, %v2235
        %2237 = vdwg.mxu0
        %2238 = vst.msk [vmem:[%s484] sm:$0xff] %vm568, %v2219
        %2239 = vst.msk [vmem:[%s484 + $0x8] sm:$0xff] %vm568, %v2221
        %2240 = vst.msk [vmem:[%s484 + $0x10] sm:$0xff] %vm568, %v2224
        %2241 = vst.msk [vmem:[%s484 + $0x18] sm:$0xff] %vm568, %v2226
        %2242 = vst.msk [vmem:[%s484 + $0x20] sm:$0xff] %vm568, %v2229
        %2243 = vst.msk [vmem:[%s484 + $0x28] sm:$0xff] %vm568, %v2231
        %2244 = vst.msk [vmem:[%s484 + $0x30] sm:$0xff] %vm568, %v2234
        %2245 = vst.msk [vmem:[%s484 + $0x38] sm:$0xff] %vm568, %v2236
        %s2246 = sand.u32 %s277, 1
        %s2247 = scalar_lea.sflag [#allocation4], %s2246
        %s2248 = sand.u32 %s277, 1
        %s2249 = smul.addr %s2248, 64
        %s2250 = scalar_lea.vmem [#allocation8], %s2249
        // Predicated region
        $region69: #{tpu_custom_call.1} parent=55 // pred_check
          %p2251 = pneg %p287
        $region70: #{tpu_custom_call.1} parent=55 // pred_check_branch
          %2253 = sbr.rel (%p2251) target = $region72
        $region71: #{tpu_custom_call.1} parent=55 // pred_region
          %s2254 = smul.u32 4, %s34
          %2256 = vsyncadd %s2247, 0
          %s2257 = smul.addr %s2254, 2
          %s2258 = smul.addr %s33, 32
          %s2259 = sadd.s32 %s2257, %s2258
          %s2260 = smul.addr %s2259, 8
          %s2261 = scalar_lea.hbm %s9, %s2260
          %s2262 = sshll.u32 %s2250, 4
          %s2263 = int_to_ptr.vmem [resolvable:$true] %s2262
          %s2264 = sshll.u32 %s2261, 4
          %s2265 = int_to_ptr.hbm [resolvable:$true] %s2264
          %2270 = dma.vmem_to_hbm [thread:$0]  %s2263, 1024, %s2265, %s2247, 128, 128, 8
        $region72: #{tpu_custom_call.1} parent=55 // pred_fallthru
          _
      $region56: #{tpu_custom_call.1} parent=5 // pred_fallthru
        _
      %p2271 = scmp.le.s32.totalorder 2, %s24
      // Predicated region
      $region73: #{tpu_custom_call.1} parent=5 // pred_check
        %p2272 = pneg %p2271
      $region74: #{tpu_custom_call.1} parent=5 // pred_check_branch
        %2274 = sbr.rel (%p2272) target = $region76
      $region75: #{tpu_custom_call.1} parent=5 // pred_region
        %s2275 = ssub.s32 %s24, 2
        // Predicated region
        $region77: #{tpu_custom_call.1} parent=75 // pred_check
          %p2276 = pneg %p293
        $region78: #{tpu_custom_call.1} parent=75 // pred_check_branch
          %2278 = sbr.rel (%p2276) target = $region80
        $region79: #{tpu_custom_call.1} parent=75 // pred_region
          %s2279 = sand.u32 %s278, 1
          %s2280 = scalar_lea.sflag [#allocation4], %s2279
          %s2281 = sand.u32 %s278, 1
          %s2282 = smul.addr %s2281, 64
          %s2283 = scalar_lea.vmem [#allocation8], %s2282
          %2285 = dma.done %s2280, 1024
        $region80: #{tpu_custom_call.1} parent=75 // pred_fallthru
          _
      $region76: #{tpu_custom_call.1} parent=5 // pred_fallthru
        _
    $region6: #{tpu_custom_call.1} parent=1 // loop_footer
      %s28 = sadd.s32 1, %s24
    $region7: #{tpu_custom_call.1} parent=1 // loop_footer_branch
      %23 = sbr.rel target = $region3
    $region8: #{tpu_custom_call.1} parent=1 // loop_exit
      _
    %2286 = vsyncpa [#allocation3], 1
    %s2287 = scalar_lea.sflag [#allocation3], 1
    %2288 = vsyncpa %s2287, 1
    %2289 = vsyncpa [#allocation6], 1
    %s2290 = scalar_lea.sflag [#allocation6], 1
    %2291 = vsyncpa %s2290, 1
    %2292 = vsyncpa [#allocation4], 1
    %s2293 = scalar_lea.sflag [#allocation4], 1
    %2294 = vsyncpa %s2293, 1

</llo_original>
